<compile_context>
chip_gen: v6e
topology: v6e:2x2x1
jax: 0.10.0
libtpu: 0.0.40
codegen_flags: <defaults>
</compile_context>

<pallas_src>
import jax
import jax.numpy as jnp
from jax.experimental import pallas as pl
from jax.experimental.pallas import tpu as pltpu

NUM_EMBED = 64  # length of the sinusoidal fourier-feature vector


# ----------------------------- small math helpers ---------------------------
def _silu(x):
    return x * jax.nn.sigmoid(x)


def _layernorm(x, gamma, beta, eps=1e-6):
    mean = jnp.mean(x, axis=-1, keepdims=True)
    var = jnp.mean(jnp.square(x - mean), axis=-1, keepdims=True)
    return (x - mean) * jax.lax.rsqrt(var + eps) * gamma + beta


def _round_up(x, m):
    return ((x + m - 1) // m) * m


def _pad_to(arr, shape):
    pads = [(0, s - d) for d, s in zip(arr.shape, shape)]
    return jnp.pad(arr, pads)


# ------------------------- time-conditioning (glue) --------------------------
# TODO(synk): FourierProjection is not part of the provided source; this follows
# the OmniLearn/PET convention (sinusoidal embedding of t, two bias-free
# Linear+SiLU layers), then dense_t = Linear(p, 2p) + exact GELU.
def _time_conditioning(time, params, projection_dim):
    p = projection_dim
    b = time.shape[0]
    half = NUM_EMBED // 2
    emb = jnp.log(10000.0) / (half - 1)
    freqs = jnp.exp(-emb * jnp.arange(half, dtype=jnp.float32))
    ang = time.reshape(b, 1).astype(jnp.float32) * freqs[None, :] * 1000.0
    feat = jnp.concatenate([jnp.sin(ang), jnp.cos(ang)], axis=-1)  # (B, NUM_EMBED)
    h = _silu(feat @ params["wf0"])
    h = _silu(h @ params["wf1"])                                    # (B, p)
    e = jax.nn.gelu(h @ params["wt"] + params["bt"], approximate=False)  # (B, 2p)
    scale = e[:, :p].reshape(b, 1, p)
    shift = e[:, p:].reshape(b, 1, p)
    return scale, shift


# --------------------------------- kernel ------------------------------------
def _make_kernel(num_blocks, nlayers, proj_valid, mlp_valid, eps=1e-6):
    """num_blocks = num_layer - 1 resnet blocks; nlayers hidden layers each."""

    def ln(x, gamma, beta, d_valid):
        # Padded feature lanes of x are exactly zero, so plain sums over the
        # full 128-lane width give the statistics of the *valid* features.
        s = jnp.sum(x, axis=-1, keepdims=True)
        s2 = jnp.sum(x * x, axis=-1, keepdims=True)
        mean = s / d_valid
        var = s2 / d_valid - mean * mean
        # gamma/beta are zero in the padded lanes -> padded lanes return to 0.
        return (x - mean) * jax.lax.rsqrt(var + eps) * gamma + beta

    def mm(a, w):  # bf16 MXU matmul, f32 accumulation (w is already bf16)
        return jnp.dot(a.astype(jnp.bfloat16), w,
                       preferred_element_type=jnp.float32)

    def kernel(x_ref, cond_ref, w_ref, v_ref, o_ref):
        x = x_ref[0]            # (TILE_N, PAD) f32, padded lanes zero
        cond = cond_ref[0]      # (2, PAD): row 0 = 1+scale, row 1 = shift
        scale1 = cond[0:1, :]
        shift = cond[1:2, :]

        wi = 0
        vi = 0

        def W():
            nonlocal wi
            w = w_ref[wi]       # (PAD, PAD) bf16
            wi += 1
            return w

        def V():
            nonlocal vi
            v = v_ref[vi:vi + 1, :]   # (1, PAD) f32
            vi += 1
            return v

        # dense_layer: Linear + SiLU, then FiLM-style time conditioning.
        h = _silu(mm(x, W()) + V())
        h = h * scale1 + shift

        # resnet blocks: LayerNorm -> ResNetDense (dropout p=0 => identity).
        for blk in range(num_blocks):
            d_valid = float(proj_valid if blk == 0 else mlp_valid)
            g, bta = V(), V()
            y = ln(h, g, bta, d_valid)
            residual = mm(y, W()) + V()
            z = y
            for _ in range(nlayers):
                z = _silu(mm(z, W()) + V())
            ls = V()
            h = residual + z * ls     # LayerScale then residual add

        # output LayerNorm + output Linear (lane-dense 128-wide store; the
        # wrapper slices back to input_dim).
        g, bta = V(), V()
        y = ln(h, g, bta, float(mlp_valid))
        o_ref[0] = mm(y, W()) + V()

    return kernel


# ------------------------------ parameter packing ----------------------------
def _pack_params(params, pad):
    """Pack all weight matrices into one bf16 stack and all per-feature vectors
    into one f32 stack, in exactly the order the kernel consumes them."""
    mats, vecs = [], []

    def add_mat(w):
        mats.append(_pad_to(w.astype(jnp.float32), (pad, pad)))

    def add_vec(v):
        vecs.append(_pad_to(v.reshape(-1).astype(jnp.float32), (pad,)))

    add_mat(params["wd"]); add_vec(params["bd"])
    for blk in params["blocks"]:
        add_vec(blk["ln_g"]); add_vec(blk["ln_b"])
        add_mat(blk["wr"]); add_vec(blk["br"])
        for (w, b) in blk["hidden"]:
            add_mat(w); add_vec(b)
        add_vec(blk["ls"])
    add_vec(params["out_ln_g"]); add_vec(params["out_ln_b"])
    add_mat(params["wo"]); add_vec(params["bo"])

    w_stack = jnp.stack(mats).astype(jnp.bfloat16)      # (num_mats, PAD, PAD)
    v_stack = jnp.stack(vecs)                           # (num_vecs, PAD) f32
    nv = v_stack.shape[0]
    nv_pad = _round_up(nv, 8)                           # keep sublane tile full
    if nv_pad != nv:
        v_stack = jnp.pad(v_stack, ((0, nv_pad - nv), (0, 0)))
    return w_stack, v_stack


# --------------------------------- wrapper -----------------------------------
def time_conditioned_resnet(x, time, params, *, num_layer, input_dim,
                            projection_dim, mlp_dim):
    B, N, _ = x.shape
    pad = _round_up(max(input_dim, projection_dim, mlp_dim, 128), 128)

    # Time-conditioning glue (tiny, per-batch); fold the +1 into scale so the
    # kernel does a single fused multiply-add.
    scale, shift = _time_conditioning(time, params, projection_dim)  # (B,1,p)
    cond = jnp.concatenate([1.0 + scale, shift], axis=1)             # (B,2,p)
    cond = _pad_to(cond.astype(jnp.float32), (B, 2, pad))

    x_p = _pad_to(x.astype(jnp.float32), (B, N, pad))
    w_stack, v_stack = _pack_params(params, pad)

    # Token tiling: large row tiles per grid step (>=0.35us step overhead, and
    # the MXU M-dimension stays fed).  Falls back to the full token axis for
    # small N.
    tile_n = N
    for t in (512, 256, 128, 64, 32, 16, 8):
        if N % t == 0:
            tile_n = t
            break
    grid = (B, N // tile_n)

    kernel = _make_kernel(num_layer - 1, num_layer, projection_dim, mlp_dim)

    in_specs = [
        pl.BlockSpec((1, tile_n, pad), lambda b, t: (b, t, 0)),
        pl.BlockSpec((1, 2, pad), lambda b, t: (b, 0, 0)),
        # Grid-invariant parameter residents (constant index_map): one weight
        # stack + one vector stack instead of dozens of tiny per-step blocks.
        pl.BlockSpec(w_stack.shape, lambda b, t: (0, 0, 0)),
        pl.BlockSpec(v_stack.shape, lambda b, t: (0, 0)),
    ]
    out_spec = pl.BlockSpec((1, tile_n, pad), lambda b, t: (b, t, 0))

    fn = pl.pallas_call(
        kernel,
        out_shape=jax.ShapeDtypeStruct((B, N, pad), jnp.float32),
        grid=grid,
        in_specs=in_specs,
        out_specs=out_spec,
        compiler_params=pltpu.CompilerParams(
            dimension_semantics=("parallel", "parallel"),
            vmem_limit_bytes=48 * 1024 * 1024),
    )
    out_padded = fn(x_p, cond, w_stack, v_stack)
    return out_padded[..., :input_dim]


# ---------------------------- plain-JAX reference ----------------------------
def reference_forward(x, time, params, *, projection_dim):
    scale, shift = _time_conditioning(time, params, projection_dim)
    h = _silu(x @ params["wd"] + params["bd"])
    h = h * (1.0 + scale) + shift
    for blk in params["blocks"]:
        y = _layernorm(h, blk["ln_g"], blk["ln_b"])
        residual = y @ blk["wr"] + blk["br"]
        z = y
        for (w, b) in blk["hidden"]:
            z = _silu(z @ w + b)
        h = residual + z * blk["ls"]
    y = _layernorm(h, params["out_ln_g"], params["out_ln_b"])
    return y @ params["wo"] + params["bo"]


# ------------------------------ parameter init -------------------------------
def init_params(key, num_layer, input_dim, projection_dim, mlp_dim,
                layer_scale_init=1.0):
    p = projection_dim
    keys = iter(jax.random.split(key, 64))

    def dense(fan_in, fan_out):
        return jax.random.normal(next(keys), (fan_in, fan_out), jnp.float32) * 0.05

    def bias(dim):
        return jax.random.normal(next(keys), (1, dim), jnp.float32) * 0.05

    params = {
        "wf0": dense(NUM_EMBED, 2 * p),
        "wf1": dense(2 * p, p),
        "wt": dense(p, 2 * p),
        "bt": jax.random.normal(next(keys), (2 * p,), jnp.float32) * 0.05,
        "wd": dense(input_dim, p),
        "bd": bias(p),
    }
    blocks = []
    for i in range(num_layer - 1):
        d_in = p if i == 0 else mlp_dim
        blk = {
            "ln_g": 1.0 + jax.random.normal(next(keys), (1, d_in), jnp.float32) * 0.01,
            "ln_b": jax.random.normal(next(keys), (1, d_in), jnp.float32) * 0.01,
            "wr": dense(d_in, mlp_dim),
            "br": bias(mlp_dim),
            "hidden": [],
            "ls": jnp.full((1, mlp_dim), layer_scale_init, jnp.float32),
        }
        for j in range(num_layer):  # ResNetDense uses nlayers == num_layer
            f_in = d_in if j == 0 else mlp_dim
            blk["hidden"].append((dense(f_in, mlp_dim), bias(mlp_dim)))
        blocks.append(blk)
    params["blocks"] = blocks
    params["out_ln_g"] = jnp.ones((1, mlp_dim), jnp.float32)
    params["out_ln_b"] = jnp.zeros((1, mlp_dim), jnp.float32)
    # NOTE: the PyTorch __init__ zero-inits out.weight; here we use small
    # deterministic random weights so the whole pipeline is exercised.
    params["wo"] = dense(mlp_dim, input_dim)
    params["bo"] = bias(input_dim)
    return params


# ----------------------------------- main ------------------------------------
if __name__ == "__main__":
    B, N = 2, 8
    input_dim, projection_dim, mlp_dim = 4, 32, 32
    num_layer = 3  # -> 2 resnet blocks, each with 3 hidden layers

    key = jax.random.PRNGKey(0)
    kx, kt, kp = jax.random.split(key, 3)
    x = jax.random.normal(kx, (B, N, input_dim), jnp.float32)
    time = jax.random.uniform(kt, (B, 1), jnp.float32)
    params = init_params(kp, num_layer, input_dim, projection_dim, mlp_dim)

    out = time_conditioned_resnet(
        x, time, params, num_layer=num_layer, input_dim=input_dim,
        projection_dim=projection_dim, mlp_dim=mlp_dim)
    out = jax.block_until_ready(out)

    ref = reference_forward(x, time, params, projection_dim=projection_dim)
    assert out.shape == (B, N, input_dim), out.shape
    if not bool(jnp.allclose(out, ref, atol=2e-2, rtol=2e-2)):
        raise AssertionError(
            f"kernel/reference mismatch, max abs err={float(jnp.max(jnp.abs(out - ref)))}")
    print("KERNEL_OK")
</pallas_src>

<mosaic_0001>
module attributes {stable_mosaic.version = 11 : i64} {
  func.func @kernel(%arg0: i32, %arg1: i32, %arg2: memref<1x8x128xf32, #tpu.memory_space<vmem>>, %arg3: memref<1x2x128xf32, #tpu.memory_space<vmem>>, %arg4: memref<10x128x128xbf16, #tpu.memory_space<vmem>>, %arg5: memref<24x128xf32, #tpu.memory_space<vmem>>, %arg6: memref<1x8x128xf32, #tpu.memory_space<vmem>>) attributes {dimension_semantics = [#tpu.dimension_semantics<parallel>, #tpu.dimension_semantics<parallel>], iteration_bounds = array<i64: 2, 1>, scalar_prefetch = 0 : i64, scratch_operands = 0 : i64, tpu.core_type = #tpu.core_type<tc>, window_params = [{transform_indices = @transform_0, window_bounds = array<i64: 1, 8, 128>}, {transform_indices = @transform_1, window_bounds = array<i64: 1, 2, 128>}, {pipeline_mode = #tpu.pipeline_mode<synchronous>, transform_indices = @transform_2, window_bounds = array<i64: 10, 128, 128>}, {pipeline_mode = #tpu.pipeline_mode<synchronous>, transform_indices = @transform_3, window_bounds = array<i64: 24, 128>}, {transform_indices = @transform_4, window_bounds = array<i64: 1, 8, 128>}]} {
    %c0 = arith.constant 0 : index
    %c0_0 = arith.constant 0 : index
    %c0_1 = arith.constant 0 : index
    %0 = vector.load %arg2[%c0, %c0_0, %c0_1] : memref<1x8x128xf32, #tpu.memory_space<vmem>>, vector<1x8x128xf32>
    %1 = vector.shape_cast %0 : vector<1x8x128xf32> to vector<8x128xf32>
    %c0_2 = arith.constant 0 : index
    %c0_3 = arith.constant 0 : index
    %c0_4 = arith.constant 0 : index
    %2 = vector.load %arg3[%c0_2, %c0_3, %c0_4] : memref<1x2x128xf32, #tpu.memory_space<vmem>>, vector<1x2x128xf32>
    %3 = vector.shape_cast %2 : vector<1x2x128xf32> to vector<2x128xf32>
    %4 = vector.extract_strided_slice %3 {offsets = [0, 0], sizes = [1, 128], strides = [1, 1]} : vector<2x128xf32> to vector<1x128xf32>
    %5 = vector.extract_strided_slice %3 {offsets = [1, 0], sizes = [1, 128], strides = [1, 1]} : vector<2x128xf32> to vector<1x128xf32>
    %c0_5 = arith.constant 0 : index
    %c0_6 = arith.constant 0 : index
    %c0_7 = arith.constant 0 : index
    %6 = vector.load %arg4[%c0_5, %c0_6, %c0_7] : memref<10x128x128xbf16, #tpu.memory_space<vmem>>, vector<1x128x128xbf16>
    %7 = vector.shape_cast %6 : vector<1x128x128xbf16> to vector<128x128xbf16>
    %8 = arith.truncf %1 : vector<8x128xf32> to vector<8x128xbf16>
    %cst = arith.constant dense<0.000000e+00> : vector<8x128xf32>
    %9 = tpu.matmul %8, %7, %cst {dimension_numbers = #tpu.dot_dimension_numbers<[1], [0], [0], [1], [0, 0, 1, 1], [], []>} : vector<8x128xbf16>, vector<128x128xbf16>, vector<8x128xf32> -> vector<8x128xf32>
    %c0_8 = arith.constant 0 : index
    %c0_9 = arith.constant 0 : index
    %10 = vector.load %arg5[%c0_8, %c0_9] : memref<24x128xf32, #tpu.memory_space<vmem>>, vector<1x128xf32>
    %11 = vector.broadcast %10 : vector<1x128xf32> to vector<8x128xf32>
    %12 = arith.addf %9, %11 : vector<8x128xf32>
    %13 = arith.negf %12 : vector<8x128xf32>
    %14 = math.exp %13 : vector<8x128xf32>
    %cst_10 = arith.constant 1.000000e+00 : f32
    %15 = vector.broadcast %cst_10 : f32 to vector<8x128xf32>
    %16 = arith.addf %15, %14 : vector<8x128xf32>
    %17 = arith.divf %15, %16 : vector<8x128xf32>
    %18 = arith.mulf %12, %17 : vector<8x128xf32>
    %19 = vector.broadcast %4 : vector<1x128xf32> to vector<8x128xf32>
    %20 = arith.mulf %18, %19 : vector<8x128xf32>
    %21 = vector.broadcast %5 : vector<1x128xf32> to vector<8x128xf32>
    %22 = arith.addf %20, %21 : vector<8x128xf32>
    %c1 = arith.constant 1 : index
    %c0_11 = arith.constant 0 : index
    %23 = vector.load %arg5[%c1, %c0_11] : memref<24x128xf32, #tpu.memory_space<vmem>>, vector<1x128xf32>
    %c2 = arith.constant 2 : index
    %c0_12 = arith.constant 0 : index
    %24 = vector.load %arg5[%c2, %c0_12] : memref<24x128xf32, #tpu.memory_space<vmem>>, vector<1x128xf32>
    %cst_13 = arith.constant dense<0.000000e+00> : vector<8xf32>
    %25 = vector.multi_reduction <add>, %22, %cst_13 [1] : vector<8x128xf32> to vector<8xf32>
    %26 = vector.shape_cast %25 : vector<8xf32> to vector<8x1xf32>
    %27 = arith.mulf %22, %22 : vector<8x128xf32>
    %cst_14 = arith.constant dense<0.000000e+00> : vector<8xf32>
    %28 = vector.multi_reduction <add>, %27, %cst_14 [1] : vector<8x128xf32> to vector<8xf32>
    %29 = vector.shape_cast %28 : vector<8xf32> to vector<8x1xf32>
    %cst_15 = arith.constant 3.200000e+01 : f32
    %30 = vector.broadcast %cst_15 : f32 to vector<8x1xf32>
    %31 = arith.divf %26, %30 : vector<8x1xf32>
    %cst_16 = arith.constant 3.200000e+01 : f32
    %32 = vector.broadcast %cst_16 : f32 to vector<8x1xf32>
    %33 = arith.divf %29, %32 : vector<8x1xf32>
    %34 = arith.mulf %31, %31 : vector<8x1xf32>
    %35 = arith.subf %33, %34 : vector<8x1xf32>
    %36 = vector.broadcast %31 : vector<8x1xf32> to vector<8x128xf32>
    %37 = arith.subf %22, %36 : vector<8x128xf32>
    %cst_17 = arith.constant 9.99999997E-7 : f32
    %38 = vector.broadcast %cst_17 : f32 to vector<8x1xf32>
    %39 = arith.addf %35, %38 : vector<8x1xf32>
    %40 = math.rsqrt %39 : vector<8x1xf32>
    %41 = vector.broadcast %40 : vector<8x1xf32> to vector<8x128xf32>
    %42 = arith.mulf %37, %41 : vector<8x128xf32>
    %43 = vector.broadcast %23 : vector<1x128xf32> to vector<8x128xf32>
    %44 = arith.mulf %42, %43 : vector<8x128xf32>
    %45 = vector.broadcast %24 : vector<1x128xf32> to vector<8x128xf32>
    %46 = arith.addf %44, %45 : vector<8x128xf32>
    %c1_18 = arith.constant 1 : index
    %c0_19 = arith.constant 0 : index
    %c0_20 = arith.constant 0 : index
    %47 = vector.load %arg4[%c1_18, %c0_19, %c0_20] : memref<10x128x128xbf16, #tpu.memory_space<vmem>>, vector<1x128x128xbf16>
    %48 = vector.shape_cast %47 : vector<1x128x128xbf16> to vector<128x128xbf16>
    %49 = arith.truncf %46 : vector<8x128xf32> to vector<8x128xbf16>
    %cst_21 = arith.constant dense<0.000000e+00> : vector<8x128xf32>
    %50 = tpu.matmul %49, %48, %cst_21 {dimension_numbers = #tpu.dot_dimension_numbers<[1], [0], [0], [1], [0, 0, 1, 1], [], []>} : vector<8x128xbf16>, vector<128x128xbf16>, vector<8x128xf32> -> vector<8x128xf32>
    %c3 = arith.constant 3 : index
    %c0_22 = arith.constant 0 : index
    %51 = vector.load %arg5[%c3, %c0_22] : memref<24x128xf32, #tpu.memory_space<vmem>>, vector<1x128xf32>
    %52 = vector.broadcast %51 : vector<1x128xf32> to vector<8x128xf32>
    %53 = arith.addf %50, %52 : vector<8x128xf32>
    %c2_23 = arith.constant 2 : index
    %c0_24 = arith.constant 0 : index
    %c0_25 = arith.constant 0 : index
    %54 = vector.load %arg4[%c2_23, %c0_24, %c0_25] : memref<10x128x128xbf16, #tpu.memory_space<vmem>>, vector<1x128x128xbf16>
    %55 = vector.shape_cast %54 : vector<1x128x128xbf16> to vector<128x128xbf16>
    %56 = arith.truncf %46 : vector<8x128xf32> to vector<8x128xbf16>
    %cst_26 = arith.constant dense<0.000000e+00> : vector<8x128xf32>
    %57 = tpu.matmul %56, %55, %cst_26 {dimension_numbers = #tpu.dot_dimension_numbers<[1], [0], [0], [1], [0, 0, 1, 1], [], []>} : vector<8x128xbf16>, vector<128x128xbf16>, vector<8x128xf32> -> vector<8x128xf32>
    %c4 = arith.constant 4 : index
    %c0_27 = arith.constant 0 : index
    %58 = vector.load %arg5[%c4, %c0_27] : memref<24x128xf32, #tpu.memory_space<vmem>>, vector<1x128xf32>
    %59 = vector.broadcast %58 : vector<1x128xf32> to vector<8x128xf32>
    %60 = arith.addf %57, %59 : vector<8x128xf32>
    %61 = arith.negf %60 : vector<8x128xf32>
    %62 = math.exp %61 : vector<8x128xf32>
    %cst_28 = arith.constant 1.000000e+00 : f32
    %63 = vector.broadcast %cst_28 : f32 to vector<8x128xf32>
    %64 = arith.addf %63, %62 : vector<8x128xf32>
    %65 = arith.divf %63, %64 : vector<8x128xf32>
    %66 = arith.mulf %60, %65 : vector<8x128xf32>
    %c3_29 = arith.constant 3 : index
    %c0_30 = arith.constant 0 : index
    %c0_31 = arith.constant 0 : index
    %67 = vector.load %arg4[%c3_29, %c0_30, %c0_31] : memref<10x128x128xbf16, #tpu.memory_space<vmem>>, vector<1x128x128xbf16>
    %68 = vector.shape_cast %67 : vector<1x128x128xbf16> to vector<128x128xbf16>
    %69 = arith.truncf %66 : vector<8x128xf32> to vector<8x128xbf16>
    %cst_32 = arith.constant dense<0.000000e+00> : vector<8x128xf32>
    %70 = tpu.matmul %69, %68, %cst_32 {dimension_numbers = #tpu.dot_dimension_numbers<[1], [0], [0], [1], [0, 0, 1, 1], [], []>} : vector<8x128xbf16>, vector<128x128xbf16>, vector<8x128xf32> -> vector<8x128xf32>
    %c5 = arith.constant 5 : index
    %c0_33 = arith.constant 0 : index
    %71 = vector.load %arg5[%c5, %c0_33] : memref<24x128xf32, #tpu.memory_space<vmem>>, vector<1x128xf32>
    %72 = vector.broadcast %71 : vector<1x128xf32> to vector<8x128xf32>
    %73 = arith.addf %70, %72 : vector<8x128xf32>
    %74 = arith.negf %73 : vector<8x128xf32>
    %75 = math.exp %74 : vector<8x128xf32>
    %cst_34 = arith.constant 1.000000e+00 : f32
    %76 = vector.broadcast %cst_34 : f32 to vector<8x128xf32>
    %77 = arith.addf %76, %75 : vector<8x128xf32>
    %78 = arith.divf %76, %77 : vector<8x128xf32>
    %79 = arith.mulf %73, %78 : vector<8x128xf32>
    %c4_35 = arith.constant 4 : index
    %c0_36 = arith.constant 0 : index
    %c0_37 = arith.constant 0 : index
    %80 = vector.load %arg4[%c4_35, %c0_36, %c0_37] : memref<10x128x128xbf16, #tpu.memory_space<vmem>>, vector<1x128x128xbf16>
    %81 = vector.shape_cast %80 : vector<1x128x128xbf16> to vector<128x128xbf16>
    %82 = arith.truncf %79 : vector<8x128xf32> to vector<8x128xbf16>
    %cst_38 = arith.constant dense<0.000000e+00> : vector<8x128xf32>
    %83 = tpu.matmul %82, %81, %cst_38 {dimension_numbers = #tpu.dot_dimension_numbers<[1], [0], [0], [1], [0, 0, 1, 1], [], []>} : vector<8x128xbf16>, vector<128x128xbf16>, vector<8x128xf32> -> vector<8x128xf32>
    %c6 = arith.constant 6 : index
    %c0_39 = arith.constant 0 : index
    %84 = vector.load %arg5[%c6, %c0_39] : memref<24x128xf32, #tpu.memory_space<vmem>>, vector<1x128xf32>
    %85 = vector.broadcast %84 : vector<1x128xf32> to vector<8x128xf32>
    %86 = arith.addf %83, %85 : vector<8x128xf32>
    %87 = arith.negf %86 : vector<8x128xf32>
    %88 = math.exp %87 : vector<8x128xf32>
    %cst_40 = arith.constant 1.000000e+00 : f32
    %89 = vector.broadcast %cst_40 : f32 to vector<8x128xf32>
    %90 = arith.addf %89, %88 : vector<8x128xf32>
    %91 = arith.divf %89, %90 : vector<8x128xf32>
    %92 = arith.mulf %86, %91 : vector<8x128xf32>
    %c7 = arith.constant 7 : index
    %c0_41 = arith.constant 0 : index
    %93 = vector.load %arg5[%c7, %c0_41] : memref<24x128xf32, #tpu.memory_space<vmem>>, vector<1x128xf32>
    %94 = vector.broadcast %93 : vector<1x128xf32> to vector<8x128xf32>
    %95 = arith.mulf %92, %94 : vector<8x128xf32>
    %96 = arith.addf %53, %95 : vector<8x128xf32>
    %c8 = arith.constant 8 : index
    %c0_42 = arith.constant 0 : index
    %97 = vector.load %arg5[%c8, %c0_42] : memref<24x128xf32, #tpu.memory_space<vmem>>, vector<1x128xf32>
    %c9 = arith.constant 9 : index
    %c0_43 = arith.constant 0 : index
    %98 = vector.load %arg5[%c9, %c0_43] : memref<24x128xf32, #tpu.memory_space<vmem>>, vector<1x128xf32>
    %cst_44 = arith.constant dense<0.000000e+00> : vector<8xf32>
    %99 = vector.multi_reduction <add>, %96, %cst_44 [1] : vector<8x128xf32> to vector<8xf32>
    %100 = vector.shape_cast %99 : vector<8xf32> to vector<8x1xf32>
    %101 = arith.mulf %96, %96 : vector<8x128xf32>
    %cst_45 = arith.constant dense<0.000000e+00> : vector<8xf32>
    %102 = vector.multi_reduction <add>, %101, %cst_45 [1] : vector<8x128xf32> to vector<8xf32>
    %103 = vector.shape_cast %102 : vector<8xf32> to vector<8x1xf32>
    %cst_46 = arith.constant 3.200000e+01 : f32
    %104 = vector.broadcast %cst_46 : f32 to vector<8x1xf32>
    %105 = arith.divf %100, %104 : vector<8x1xf32>
    %cst_47 = arith.constant 3.200000e+01 : f32
    %106 = vector.broadcast %cst_47 : f32 to vector<8x1xf32>
    %107 = arith.divf %103, %106 : vector<8x1xf32>
    %108 = arith.mulf %105, %105 : vector<8x1xf32>
    %109 = arith.subf %107, %108 : vector<8x1xf32>
    %110 = vector.broadcast %105 : vector<8x1xf32> to vector<8x128xf32>
    %111 = arith.subf %96, %110 : vector<8x128xf32>
    %cst_48 = arith.constant 9.99999997E-7 : f32
    %112 = vector.broadcast %cst_48 : f32 to vector<8x1xf32>
    %113 = arith.addf %109, %112 : vector<8x1xf32>
    %114 = math.rsqrt %113 : vector<8x1xf32>
    %115 = vector.broadcast %114 : vector<8x1xf32> to vector<8x128xf32>
    %116 = arith.mulf %111, %115 : vector<8x128xf32>
    %117 = vector.broadcast %97 : vector<1x128xf32> to vector<8x128xf32>
    %118 = arith.mulf %116, %117 : vector<8x128xf32>
    %119 = vector.broadcast %98 : vector<1x128xf32> to vector<8x128xf32>
    %120 = arith.addf %118, %119 : vector<8x128xf32>
    %c5_49 = arith.constant 5 : index
    %c0_50 = arith.constant 0 : index
    %c0_51 = arith.constant 0 : index
    %121 = vector.load %arg4[%c5_49, %c0_50, %c0_51] : memref<10x128x128xbf16, #tpu.memory_space<vmem>>, vector<1x128x128xbf16>
    %122 = vector.shape_cast %121 : vector<1x128x128xbf16> to vector<128x128xbf16>
    %123 = arith.truncf %120 : vector<8x128xf32> to vector<8x128xbf16>
    %cst_52 = arith.constant dense<0.000000e+00> : vector<8x128xf32>
    %124 = tpu.matmul %123, %122, %cst_52 {dimension_numbers = #tpu.dot_dimension_numbers<[1], [0], [0], [1], [0, 0, 1, 1], [], []>} : vector<8x128xbf16>, vector<128x128xbf16>, vector<8x128xf32> -> vector<8x128xf32>
    %c10 = arith.constant 10 : index
    %c0_53 = arith.constant 0 : index
    %125 = vector.load %arg5[%c10, %c0_53] : memref<24x128xf32, #tpu.memory_space<vmem>>, vector<1x128xf32>
    %126 = vector.broadcast %125 : vector<1x128xf32> to vector<8x128xf32>
    %127 = arith.addf %124, %126 : vector<8x128xf32>
    %c6_54 = arith.constant 6 : index
    %c0_55 = arith.constant 0 : index
    %c0_56 = arith.constant 0 : index
    %128 = vector.load %arg4[%c6_54, %c0_55, %c0_56] : memref<10x128x128xbf16, #tpu.memory_space<vmem>>, vector<1x128x128xbf16>
    %129 = vector.shape_cast %128 : vector<1x128x128xbf16> to vector<128x128xbf16>
    %130 = arith.truncf %120 : vector<8x128xf32> to vector<8x128xbf16>
    %cst_57 = arith.constant dense<0.000000e+00> : vector<8x128xf32>
    %131 = tpu.matmul %130, %129, %cst_57 {dimension_numbers = #tpu.dot_dimension_numbers<[1], [0], [0], [1], [0, 0, 1, 1], [], []>} : vector<8x128xbf16>, vector<128x128xbf16>, vector<8x128xf32> -> vector<8x128xf32>
    %c11 = arith.constant 11 : index
    %c0_58 = arith.constant 0 : index
    %132 = vector.load %arg5[%c11, %c0_58] : memref<24x128xf32, #tpu.memory_space<vmem>>, vector<1x128xf32>
    %133 = vector.broadcast %132 : vector<1x128xf32> to vector<8x128xf32>
    %134 = arith.addf %131, %133 : vector<8x128xf32>
    %135 = arith.negf %134 : vector<8x128xf32>
    %136 = math.exp %135 : vector<8x128xf32>
    %cst_59 = arith.constant 1.000000e+00 : f32
    %137 = vector.broadcast %cst_59 : f32 to vector<8x128xf32>
    %138 = arith.addf %137, %136 : vector<8x128xf32>
    %139 = arith.divf %137, %138 : vector<8x128xf32>
    %140 = arith.mulf %134, %139 : vector<8x128xf32>
    %c7_60 = arith.constant 7 : index
    %c0_61 = arith.constant 0 : index
    %c0_62 = arith.constant 0 : index
    %141 = vector.load %arg4[%c7_60, %c0_61, %c0_62] : memref<10x128x128xbf16, #tpu.memory_space<vmem>>, vector<1x128x128xbf16>
    %142 = vector.shape_cast %141 : vector<1x128x128xbf16> to vector<128x128xbf16>
    %143 = arith.truncf %140 : vector<8x128xf32> to vector<8x128xbf16>
    %cst_63 = arith.constant dense<0.000000e+00> : vector<8x128xf32>
    %144 = tpu.matmul %143, %142, %cst_63 {dimension_numbers = #tpu.dot_dimension_numbers<[1], [0], [0], [1], [0, 0, 1, 1], [], []>} : vector<8x128xbf16>, vector<128x128xbf16>, vector<8x128xf32> -> vector<8x128xf32>
    %c12 = arith.constant 12 : index
    %c0_64 = arith.constant 0 : index
    %145 = vector.load %arg5[%c12, %c0_64] : memref<24x128xf32, #tpu.memory_space<vmem>>, vector<1x128xf32>
    %146 = vector.broadcast %145 : vector<1x128xf32> to vector<8x128xf32>
    %147 = arith.addf %144, %146 : vector<8x128xf32>
    %148 = arith.negf %147 : vector<8x128xf32>
    %149 = math.exp %148 : vector<8x128xf32>
    %cst_65 = arith.constant 1.000000e+00 : f32
    %150 = vector.broadcast %cst_65 : f32 to vector<8x128xf32>
    %151 = arith.addf %150, %149 : vector<8x128xf32>
    %152 = arith.divf %150, %151 : vector<8x128xf32>
    %153 = arith.mulf %147, %152 : vector<8x128xf32>
    %c8_66 = arith.constant 8 : index
    %c0_67 = arith.constant 0 : index
    %c0_68 = arith.constant 0 : index
    %154 = vector.load %arg4[%c8_66, %c0_67, %c0_68] : memref<10x128x128xbf16, #tpu.memory_space<vmem>>, vector<1x128x128xbf16>
    %155 = vector.shape_cast %154 : vector<1x128x128xbf16> to vector<128x128xbf16>
    %156 = arith.truncf %153 : vector<8x128xf32> to vector<8x128xbf16>
    %cst_69 = arith.constant dense<0.000000e+00> : vector<8x128xf32>
    %157 = tpu.matmul %156, %155, %cst_69 {dimension_numbers = #tpu.dot_dimension_numbers<[1], [0], [0], [1], [0, 0, 1, 1], [], []>} : vector<8x128xbf16>, vector<128x128xbf16>, vector<8x128xf32> -> vector<8x128xf32>
    %c13 = arith.constant 13 : index
    %c0_70 = arith.constant 0 : index
    %158 = vector.load %arg5[%c13, %c0_70] : memref<24x128xf32, #tpu.memory_space<vmem>>, vector<1x128xf32>
    %159 = vector.broadcast %158 : vector<1x128xf32> to vector<8x128xf32>
    %160 = arith.addf %157, %159 : vector<8x128xf32>
    %161 = arith.negf %160 : vector<8x128xf32>
    %162 = math.exp %161 : vector<8x128xf32>
    %cst_71 = arith.constant 1.000000e+00 : f32
    %163 = vector.broadcast %cst_71 : f32 to vector<8x128xf32>
    %164 = arith.addf %163, %162 : vector<8x128xf32>
    %165 = arith.divf %163, %164 : vector<8x128xf32>
    %166 = arith.mulf %160, %165 : vector<8x128xf32>
    %c14 = arith.constant 14 : index
    %c0_72 = arith.constant 0 : index
    %167 = vector.load %arg5[%c14, %c0_72] : memref<24x128xf32, #tpu.memory_space<vmem>>, vector<1x128xf32>
    %168 = vector.broadcast %167 : vector<1x128xf32> to vector<8x128xf32>
    %169 = arith.mulf %166, %168 : vector<8x128xf32>
    %170 = arith.addf %127, %169 : vector<8x128xf32>
    %c15 = arith.constant 15 : index
    %c0_73 = arith.constant 0 : index
    %171 = vector.load %arg5[%c15, %c0_73] : memref<24x128xf32, #tpu.memory_space<vmem>>, vector<1x128xf32>
    %c16 = arith.constant 16 : index
    %c0_74 = arith.constant 0 : index
    %172 = vector.load %arg5[%c16, %c0_74] : memref<24x128xf32, #tpu.memory_space<vmem>>, vector<1x128xf32>
    %cst_75 = arith.constant dense<0.000000e+00> : vector<8xf32>
    %173 = vector.multi_reduction <add>, %170, %cst_75 [1] : vector<8x128xf32> to vector<8xf32>
    %174 = vector.shape_cast %173 : vector<8xf32> to vector<8x1xf32>
    %175 = arith.mulf %170, %170 : vector<8x128xf32>
    %cst_76 = arith.constant dense<0.000000e+00> : vector<8xf32>
    %176 = vector.multi_reduction <add>, %175, %cst_76 [1] : vector<8x128xf32> to vector<8xf32>
    %177 = vector.shape_cast %176 : vector<8xf32> to vector<8x1xf32>
    %cst_77 = arith.constant 3.200000e+01 : f32
    %178 = vector.broadcast %cst_77 : f32 to vector<8x1xf32>
    %179 = arith.divf %174, %178 : vector<8x1xf32>
    %cst_78 = arith.constant 3.200000e+01 : f32
    %180 = vector.broadcast %cst_78 : f32 to vector<8x1xf32>
    %181 = arith.divf %177, %180 : vector<8x1xf32>
    %182 = arith.mulf %179, %179 : vector<8x1xf32>
    %183 = arith.subf %181, %182 : vector<8x1xf32>
    %184 = vector.broadcast %179 : vector<8x1xf32> to vector<8x128xf32>
    %185 = arith.subf %170, %184 : vector<8x128xf32>
    %cst_79 = arith.constant 9.99999997E-7 : f32
    %186 = vector.broadcast %cst_79 : f32 to vector<8x1xf32>
    %187 = arith.addf %183, %186 : vector<8x1xf32>
    %188 = math.rsqrt %187 : vector<8x1xf32>
    %189 = vector.broadcast %188 : vector<8x1xf32> to vector<8x128xf32>
    %190 = arith.mulf %185, %189 : vector<8x128xf32>
    %191 = vector.broadcast %171 : vector<1x128xf32> to vector<8x128xf32>
    %192 = arith.mulf %190, %191 : vector<8x128xf32>
    %193 = vector.broadcast %172 : vector<1x128xf32> to vector<8x128xf32>
    %194 = arith.addf %192, %193 : vector<8x128xf32>
    %c9_80 = arith.constant 9 : index
    %c0_81 = arith.constant 0 : index
    %c0_82 = arith.constant 0 : index
    %195 = vector.load %arg4[%c9_80, %c0_81, %c0_82] : memref<10x128x128xbf16, #tpu.memory_space<vmem>>, vector<1x128x128xbf16>
    %196 = vector.shape_cast %195 : vector<1x128x128xbf16> to vector<128x128xbf16>
    %197 = arith.truncf %194 : vector<8x128xf32> to vector<8x128xbf16>
    %cst_83 = arith.constant dense<0.000000e+00> : vector<8x128xf32>
    %198 = tpu.matmul %197, %196, %cst_83 {dimension_numbers = #tpu.dot_dimension_numbers<[1], [0], [0], [1], [0, 0, 1, 1], [], []>} : vector<8x128xbf16>, vector<128x128xbf16>, vector<8x128xf32> -> vector<8x128xf32>
    %c17 = arith.constant 17 : index
    %c0_84 = arith.constant 0 : index
    %199 = vector.load %arg5[%c17, %c0_84] : memref<24x128xf32, #tpu.memory_space<vmem>>, vector<1x128xf32>
    %200 = vector.broadcast %199 : vector<1x128xf32> to vector<8x128xf32>
    %201 = arith.addf %198, %200 : vector<8x128xf32>
    %c0_85 = arith.constant 0 : index
    %c0_86 = arith.constant 0 : index
    %c0_87 = arith.constant 0 : index
    %202 = vector.load %arg6[%c0_85, %c0_86, %c0_87] : memref<1x8x128xf32, #tpu.memory_space<vmem>>, vector<1x8x128xf32>
    %203 = vector.shape_cast %202 : vector<1x8x128xf32> to vector<8x128xf32>
    %204 = vector.shape_cast %201 : vector<8x128xf32> to vector<1x8x128xf32>
    tpu.vector_store %arg6[%c0_85, %c0_86, %c0_87], %204 {strides = array<i32>} : memref<1x8x128xf32, #tpu.memory_space<vmem>>, vector<1x8x128xf32>,
    return
  }
  func.func @transform_0(%arg0: i32, %arg1: i32) -> (i32, i32, i32) {
    %c0_i32 = arith.constant 0 : i32
    %c0_i32_0 = arith.constant 0 : i32
    return %arg0, %arg1, %c0_i32 : i32, i32, i32
  }
  func.func @transform_1(%arg0: i32, %arg1: i32) -> (i32, i32, i32) {
    %c0_i32 = arith.constant 0 : i32
    %c0_i32_0 = arith.constant 0 : i32
    %c0_i32_1 = arith.constant 0 : i32
    return %arg0, %c0_i32, %c0_i32_0 : i32, i32, i32
  }
  func.func @transform_2(%arg0: i32, %arg1: i32) -> (i32, i32, i32) {
    %c0_i32 = arith.constant 0 : i32
    %c0_i32_0 = arith.constant 0 : i32
    %c0_i32_1 = arith.constant 0 : i32
    %c0_i32_2 = arith.constant 0 : i32
    return %c0_i32, %c0_i32_0, %c0_i32_1 : i32, i32, i32
  }
  func.func @transform_3(%arg0: i32, %arg1: i32) -> (i32, i32) {
    %c0_i32 = arith.constant 0 : i32
    %c0_i32_0 = arith.constant 0 : i32
    %c0_i32_1 = arith.constant 0 : i32
    return %c0_i32, %c0_i32_0 : i32, i32
  }
  func.func @transform_4(%arg0: i32, %arg1: i32) -> (i32, i32, i32) {
    %c0_i32 = arith.constant 0 : i32
    %c0_i32_0 = arith.constant 0 : i32
    return %arg0, %arg1, %c0_i32 : i32, i32, i32
  }
}

</mosaic_0001>

<llo_original>
// kernel: tpu_custom_call.1
$region0: #{tpu_custom_call.1}
  #allocation0 [shape = 'u32[]', space=smem, size = 0x4, offset = 0x4, fixed_abs, tag = 'smem constant byte address 0x4 - core index']
  #allocation1 [shape = 'u32[144,128]{1,0:T(1,128)}', space=vmem, size = 0x12000, scoped, tag = 'internal scratch']
  %s0 = inlined_call_operand.hbm [shape: f32[2,8,128], index: 0, kind: input, shape index: {}]
  %s1 = inlined_call_operand.hbm [shape: f32[2,2,128], index: 1, kind: input, shape index: {}]
  %s2 = inlined_call_operand.hbm [shape: bf16[10,128,128], index: 2, kind: input, shape index: {}]
  %s3 = inlined_call_operand.hbm [shape: f32[24,128], index: 3, kind: input, shape index: {}]
  %s4 = inlined_call_operand.hbm [shape: f32[2,8,128], index: 4, kind: output, shape index: {}]
  %s5 = sld [smem:[#allocation0]]
  $region65: #{tpu_custom_call.1} parent=0
    _
  %s7 = ssub.s32 1, %s5
  %s8 = scalar_select 0, %s7, %s5
  $region1: #{tpu_custom_call.1} parent=0
    #allocation2 [shape = 'u8[8192]{0}', space=vmem, size = 0x2000, scoped, tag = 'input window, operand 0']
    #allocation3 [shape = 's32[2]{0}', space=sflag, size = 0x8, scoped, tag = 'scoped memory for tpu_custom_call.1']
    #allocation4 [shape = 's32[2]{0}', space=sflag, size = 0x8, scoped, tag = 'scoped memory for tpu_custom_call.1']
    #allocation5 [shape = 'u8[2048]{0}', space=vmem, size = 0x800, scoped, tag = 'input window, operand 1']
    #allocation6 [shape = 's32[2]{0}', space=sflag, size = 0x8, scoped, tag = 'scoped memory for tpu_custom_call.1']
    #allocation7 [shape = 'u8[327680]{0}', space=vmem, size = 0x50000, scoped, tag = 'input window, operand 2, single buffered']
    #allocation8 [shape = 'u8[12288]{0}', space=vmem, size = 0x3000, scoped, tag = 'input window, operand 3, single buffered']
    #allocation9 [shape = 's32[1]{0}', space=sflag, size = 0x4, scoped, tag = 'scoped memory for tpu_custom_call.1']
    #allocation10 [shape = 'u8[8192]{0}', space=vmem, size = 0x2000, scoped, tag = 'output window, operand 0']
    %9 = vsyncpa [#allocation3], 0
    %s10 = scalar_lea.sflag [#allocation3], 1
    %11 = vsyncpa %s10, 0
    %12 = vsyncpa [#allocation6], 0
    %s13 = scalar_lea.sflag [#allocation6], 1
    %14 = vsyncpa %s13, 0
    %15 = vsyncpa [#allocation9], 0
    %16 = vsyncpa [#allocation4], 0
    %s17 = scalar_lea.sflag [#allocation4], 1
    %18 = vsyncpa %s17, 0
    loop: start=0, step=1, limit=4
    $region2: #{tpu_custom_call.1} parent=1 // loop_pre_header
      _
    $region3: #{tpu_custom_call.1} parent=1 // loop_header
      %s20 = sphi 0, %s24
      %p21 = scmp.ge.s32.totalorder %s20, 4
      %s27 = sphi 0, %s39
      %s28 = sphi 0, %s35
      %s29 = sphi 0, %s27
      %s30 = sphi 0, %s28
      %s31 = sphi 0, %s29
      %s32 = sphi 0, %s30
      %s44 = sphi 0, %s46
      %s47 = sphi 0, %s44
      %s48 = sphi 0, %s47
      %s64 = sphi 0, %s48
      %s70 = sphi 0, %s72
      %s73 = sphi 0, %s70
      %s74 = sphi 0, %s73
      %s90 = sphi 0, %s74
      %s94 = sphi 0, %s94
      %s96 = sphi 0, %s94
      %s97 = sphi 0, %s96
      %s111 = sphi 0, %s97
      %s115 = sphi 0, %s115
      %s117 = sphi 0, %s115
      %s118 = sphi 0, %s117
      %s132 = sphi 0, %s118
      %s140 = sphi 0, %s142
      %s143 = sphi 0, %s140
      %s144 = sphi 0, %s143
      %s160 = sphi 0, %s144
    $region4: #{tpu_custom_call.1} parent=1 // loop_header_branch
      %23 = sbr.rel (%p21) target = $region8
    $region5: #{tpu_custom_call.1} parent=1 // loop_body
      %s25 = ssub.s32 %s20, 1
      %s26 = ssub.s32 %s20, 2
      %s33 = sadd.s32 1, %s28
      %p34 = scmp.ge.s32.totalorder %s33, 1
      %s35 = scalar_select %p34, 0, %s33
      %s36 = sadd.s32 1, %s27
      %s37 = scalar_select %p34, %s36, %s27
      %p38 = scmp.ge.s32.totalorder %s37, 2
      %s39 = scalar_select %p38, 0, %s37
      %s40 = ssub.s32 %s27, %s39
      %s41 = ssub.s32 %s28, %s35
      %s42 = sor.u32 %s40, %s41
      %p43 = scmp.eq.s32.totalorder %s42, 0
      %s45 = sadd.s32 %s44, 1
      %s46 = scalar_select %p43, %s44, %s45
      %p49 = pneg %p43
      %p50 = scmp.eq.s32.totalorder %s20, 1
      %p51 = por %p49, %p50
      %p52 = scmp.ne.s32.totalorder %s44, %s47
      %p53 = scmp.eq.s32.totalorder %s20, 0
      %p54 = por %p52, %p53
      %p55 = scmp.ne.s32.totalorder %s44, %s47
      %p56 = scmp.eq.s32.totalorder %s25, 1
      %p57 = por %p55, %p56
      %p58 = scmp.ne.s32.totalorder %s47, %s48
      %p59 = scmp.eq.s32.totalorder %s25, 0
      %p60 = por %p58, %p59
      %p61 = scmp.ne.s32.totalorder %s47, %s48
      %p62 = scmp.eq.s32.totalorder %s26, 1
      %p63 = por %p61, %p62
      %p65 = scmp.ne.s32.totalorder %s48, %s64
      %p66 = scmp.eq.s32.totalorder %s26, 0
      %p67 = por %p65, %p66
      %s68 = ssub.s32 %s27, %s39
      %p69 = scmp.eq.s32.totalorder %s68, 0
      %s71 = sadd.s32 %s70, 1
      %s72 = scalar_select %p69, %s70, %s71
      %p75 = pneg %p69
      %p76 = scmp.eq.s32.totalorder %s20, 1
      %p77 = por %p75, %p76
      %p78 = scmp.ne.s32.totalorder %s70, %s73
      %p79 = scmp.eq.s32.totalorder %s20, 0
      %p80 = por %p78, %p79
      %p81 = scmp.ne.s32.totalorder %s70, %s73
      %p82 = scmp.eq.s32.totalorder %s25, 1
      %p83 = por %p81, %p82
      %p84 = scmp.ne.s32.totalorder %s73, %s74
      %p85 = scmp.eq.s32.totalorder %s25, 0
      %p86 = por %p84, %p85
      %p87 = scmp.ne.s32.totalorder %s73, %s74
      %p88 = scmp.eq.s32.totalorder %s26, 1
      %p89 = por %p87, %p88
      %p91 = scmp.ne.s32.totalorder %s74, %s90
      %p92 = scmp.eq.s32.totalorder %s26, 0
      %p93 = por %p91, %p92
      %s95 = sadd.s32 %s94, 1
      %p98 = scmp.eq.s32.totalorder %s20, 1
      %p99 = scmp.ne.s32.totalorder %s94, %s96
      %p100 = scmp.eq.s32.totalorder %s20, 0
      %p101 = por %p99, %p100
      %p102 = scmp.ne.s32.totalorder %s94, %s96
      %p103 = scmp.eq.s32.totalorder %s25, 1
      %p104 = por %p102, %p103
      %p105 = scmp.ne.s32.totalorder %s96, %s97
      %p106 = scmp.eq.s32.totalorder %s25, 0
      %p107 = por %p105, %p106
      %p108 = scmp.ne.s32.totalorder %s96, %s97
      %p109 = scmp.eq.s32.totalorder %s26, 1
      %p110 = por %p108, %p109
      %p112 = scmp.ne.s32.totalorder %s97, %s111
      %p113 = scmp.eq.s32.totalorder %s26, 0
      %p114 = por %p112, %p113
      %s116 = sadd.s32 %s115, 1
      %p119 = scmp.eq.s32.totalorder %s20, 1
      %p120 = scmp.ne.s32.totalorder %s115, %s117
      %p121 = scmp.eq.s32.totalorder %s20, 0
      %p122 = por %p120, %p121
      %p123 = scmp.ne.s32.totalorder %s115, %s117
      %p124 = scmp.eq.s32.totalorder %s25, 1
      %p125 = por %p123, %p124
      %p126 = scmp.ne.s32.totalorder %s117, %s118
      %p127 = scmp.eq.s32.totalorder %s25, 0
      %p128 = por %p126, %p127
      %p129 = scmp.ne.s32.totalorder %s117, %s118
      %p130 = scmp.eq.s32.totalorder %s26, 1
      %p131 = por %p129, %p130
      %p133 = scmp.ne.s32.totalorder %s118, %s132
      %p134 = scmp.eq.s32.totalorder %s26, 0
      %p135 = por %p133, %p134
      %s136 = ssub.s32 %s27, %s39
      %s137 = ssub.s32 %s28, %s35
      %s138 = sor.u32 %s136, %s137
      %p139 = scmp.eq.s32.totalorder %s138, 0
      %s141 = sadd.s32 %s140, 1
      %s142 = scalar_select %p139, %s140, %s141
      %p145 = pneg %p139
      %p146 = scmp.eq.s32.totalorder %s20, 1
      %p147 = por %p145, %p146
      %p148 = scmp.ne.s32.totalorder %s140, %s143
      %p149 = scmp.eq.s32.totalorder %s20, 0
      %p150 = por %p148, %p149
      %p151 = scmp.ne.s32.totalorder %s140, %s143
      %p152 = scmp.eq.s32.totalorder %s25, 1
      %p153 = por %p151, %p152
      %p154 = scmp.ne.s32.totalorder %s143, %s144
      %p155 = scmp.eq.s32.totalorder %s25, 0
      %p156 = por %p154, %p155
      %p157 = scmp.ne.s32.totalorder %s143, %s144
      %p158 = scmp.eq.s32.totalorder %s26, 1
      %p159 = por %p157, %p158
      %p161 = scmp.ne.s32.totalorder %s144, %s160
      %p162 = scmp.eq.s32.totalorder %s26, 0
      %p163 = por %p161, %p162
      %p164 = scmp.le.s32.totalorder 1, %s20
      %p165 = scmp.lt.s32.totalorder %s20, 3
      %p166 = pnand %p164, %p165
      %p167 = pneg %p166
      // Predicated region
      $region9: #{tpu_custom_call.1} parent=5 // pred_check
        _
      $region10: #{tpu_custom_call.1} parent=5 // pred_check_branch
        %169 = sbr.rel (%p166) target = $region12
      $region11: #{tpu_custom_call.1} parent=5 // pred_region
        %s170 = ssub.s32 %s20, 1
        // Predicated region
        $region13: #{tpu_custom_call.1} parent=11 // pred_check
          %p171 = pneg %p107
        $region14: #{tpu_custom_call.1} parent=11 // pred_check_branch
          %173 = sbr.rel (%p171) target = $region16
        $region15: #{tpu_custom_call.1} parent=11 // pred_region
          %s175 = ssub.s32 10240, 10240
          %176 = vsyncadd [#allocation6], %s175
          %s177 = sshll.u32 [#allocation7], 4
          %s178 = int_to_ptr.vmem [resolvable:$true] %s177
          %183 = dma.hbm_to_vmem [thread:$0]  %s2, 10240, %s178, [#allocation6], 64, 64, 4
        $region16: #{tpu_custom_call.1} parent=11 // pred_fallthru
          _
        // Predicated region
        $region17: #{tpu_custom_call.1} parent=11 // pred_check
          %p184 = pneg %p128
        $region18: #{tpu_custom_call.1} parent=11 // pred_check_branch
          %186 = sbr.rel (%p184) target = $region20
        $region19: #{tpu_custom_call.1} parent=11 // pred_region
          %s188 = ssub.s32 384, 384
          %189 = vsyncadd [#allocation9], %s188
          %s190 = sshll.u32 [#allocation8], 4
          %s191 = int_to_ptr.vmem [resolvable:$true] %s190
          %196 = dma.hbm_to_vmem [thread:$0]  %s3, 384, %s191, [#allocation9], 128, 128, 8
        $region20: #{tpu_custom_call.1} parent=11 // pred_fallthru
          _
      $region12: #{tpu_custom_call.1} parent=5 // pred_fallthru
        _
      %p197 = scmp.lt.s32.totalorder %s20, 2
      // Predicated region
      $region21: #{tpu_custom_call.1} parent=5 // pred_check
        %p198 = pneg %p197
      $region22: #{tpu_custom_call.1} parent=5 // pred_check_branch
        %200 = sbr.rel (%p198) target = $region24
      $region23: #{tpu_custom_call.1} parent=5 // pred_region
        // Predicated region
        $region25: #{tpu_custom_call.1} parent=23 // pred_check
          %p201 = pneg %p54
        $region26: #{tpu_custom_call.1} parent=23 // pred_check_branch
          %203 = sbr.rel (%p201) target = $region28
        $region27: #{tpu_custom_call.1} parent=23 // pred_region
          %s204 = sand.u32 %s44, 1
          %s205 = scalar_lea.sflag [#allocation3], %s204
          %s206 = sand.u32 %s44, 1
          %s207 = smul.addr %s206, 8
          %s208 = scalar_lea.vmem [#allocation2], %s207
          %s210 = ssub.s32 128, 128
          %211 = vsyncadd %s205, %s210
          %s212 = sadd.s32 %s28, %s27
          %s213 = smul.addr %s212, 128
          %s214 = scalar_lea.hbm %s0, %s213
          %s216 = sshll.u32 %s208, 4
          %s217 = int_to_ptr.vmem [resolvable:$true] %s216
          %219 = dma.hbm_to_vmem [thread:$0]  %s214, 128, %s217, %s205
        $region28: #{tpu_custom_call.1} parent=23 // pred_fallthru
          _
        // Predicated region
        $region29: #{tpu_custom_call.1} parent=23 // pred_check
          %p220 = pneg %p80
        $region30: #{tpu_custom_call.1} parent=23 // pred_check_branch
          %222 = sbr.rel (%p220) target = $region32
        $region31: #{tpu_custom_call.1} parent=23 // pred_region
          %s223 = sand.u32 %s20, 1
          %s224 = scalar_lea.sflag [#allocation6], %s223
          %s225 = sand.u32 %s70, 1
          %s226 = smul.addr %s225, 2
          %s227 = scalar_lea.vmem [#allocation5], %s226
          %s229 = ssub.s32 32, 32
          %230 = vsyncadd %s224, %s229
          %s231 = smul.addr %s27, 32
          %s232 = scalar_lea.hbm %s1, %s231
          %s234 = sshll.u32 %s227, 4
          %s235 = int_to_ptr.vmem [resolvable:$true] %s234
          %237 = dma.hbm_to_vmem [thread:$0]  %s232, 32, %s235, %s224
        $region32: #{tpu_custom_call.1} parent=23 // pred_fallthru
          _
      $region24: #{tpu_custom_call.1} parent=5 // pred_fallthru
        _
      %p238 = scmp.le.s32.totalorder 1, %s20
      %p239 = scmp.lt.s32.totalorder %s20, 3
      %p240 = pnand %p238, %p239
      %p241 = pneg %p240
      // Predicated region
      $region33: #{tpu_custom_call.1} parent=5 // pred_check
        _
      $region34: #{tpu_custom_call.1} parent=5 // pred_check_branch
        %243 = sbr.rel (%p240) target = $region36
      $region35: #{tpu_custom_call.1} parent=5 // pred_region
        %s244 = ssub.s32 %s20, 1
        %s245 = sand.u32 %s47, 1
        %s246 = scalar_lea.sflag [#allocation3], %s245
        %s247 = sand.u32 %s47, 1
        %s248 = smul.addr %s247, 8
        %s249 = scalar_lea.vmem [#allocation2], %s248
        // Predicated region
        $region37: #{tpu_custom_call.1} parent=35 // pred_check
          %p250 = pneg %p60
        $region38: #{tpu_custom_call.1} parent=35 // pred_check_branch
          %252 = sbr.rel (%p250) target = $region40
        $region39: #{tpu_custom_call.1} parent=35 // pred_region
          %253 = dma.done %s246, 128
        $region40: #{tpu_custom_call.1} parent=35 // pred_fallthru
          _
        %s254 = sand.u32 %s25, 1
        %s255 = scalar_lea.sflag [#allocation6], %s254
        %s256 = sand.u32 %s73, 1
        %s257 = smul.addr %s256, 2
        %s258 = scalar_lea.vmem [#allocation5], %s257
        // Predicated region
        $region41: #{tpu_custom_call.1} parent=35 // pred_check
          %p259 = pneg %p86
        $region42: #{tpu_custom_call.1} parent=35 // pred_check_branch
          %261 = sbr.rel (%p259) target = $region44
        $region43: #{tpu_custom_call.1} parent=35 // pred_region
          %262 = dma.done %s255, 32
        $region44: #{tpu_custom_call.1} parent=35 // pred_fallthru
          _
        // Predicated region
        $region45: #{tpu_custom_call.1} parent=35 // pred_check
          %p263 = pneg %p107
        $region46: #{tpu_custom_call.1} parent=35 // pred_check_branch
          %265 = sbr.rel (%p263) target = $region48
        $region47: #{tpu_custom_call.1} parent=35 // pred_region
          %266 = dma.done [#allocation6], 10240
        $region48: #{tpu_custom_call.1} parent=35 // pred_fallthru
          _
        // Predicated region
        $region49: #{tpu_custom_call.1} parent=35 // pred_check
          %p267 = pneg %p128
        $region50: #{tpu_custom_call.1} parent=35 // pred_check_branch
          %269 = sbr.rel (%p267) target = $region52
        $region51: #{tpu_custom_call.1} parent=35 // pred_region
          %270 = dma.done [#allocation9], 384
        $region52: #{tpu_custom_call.1} parent=35 // pred_fallthru
          _
        %s271 = sand.u32 %s47, 1
        %s272 = scalar_lea.sflag [#allocation3], %s271
        %s273 = sand.u32 %s47, 1
        %s274 = smul.addr %s273, 8
        %s275 = scalar_lea.vmem [#allocation2], %s274
        %p276 = pneg %p60
        %p277 = pneg %p57
        %s278 = sand.u32 %s25, 1
        %s279 = scalar_lea.sflag [#allocation6], %s278
        %s280 = sand.u32 %s73, 1
        %s281 = smul.addr %s280, 2
        %s282 = scalar_lea.vmem [#allocation5], %s281
        %p283 = pneg %p86
        %p284 = pneg %p83
        %p285 = pneg %p107
        %p286 = pneg %p104
        %p287 = pneg %p128
        %p288 = pneg %p125
        %p289 = pneg %p156
        %p290 = pneg %p153
        %s291 = sand.u32 %s143, 1
        %s292 = scalar_lea.sflag [#allocation4], %s291
        %s293 = sand.u32 %s143, 1
        %s294 = smul.addr %s293, 8
        %s295 = scalar_lea.vmem [#allocation10], %s294
        %v297 = vld [vmem:[%s249] sm:$0xff]
        %v298 = vld [vmem:[%s258] sm:$0x3]
        %v299 = vld [vmem:[#allocation7] sm:$0xf]
        %v300 = vld [vmem:[#allocation7 + $0x4] sm:$0xf]
        %v301 = vld [vmem:[#allocation7 + $0x8] sm:$0xf]
        %v302 = vld [vmem:[#allocation7 + $0xc] sm:$0xf]
        %v303 = vld [vmem:[#allocation7 + $0x10] sm:$0xf]
        %v304 = vld [vmem:[#allocation7 + $0x14] sm:$0xf]
        %v305 = vld [vmem:[#allocation7 + $0x18] sm:$0xf]
        %v306 = vld [vmem:[#allocation7 + $0x1c] sm:$0xf]
        %v307 = vld [vmem:[#allocation7 + $0x20] sm:$0xf]
        %v308 = vld [vmem:[#allocation7 + $0x24] sm:$0xf]
        %v309 = vld [vmem:[#allocation7 + $0x28] sm:$0xf]
        %v310 = vld [vmem:[#allocation7 + $0x2c] sm:$0xf]
        %v311 = vld [vmem:[#allocation7 + $0x30] sm:$0xf]
        %v312 = vld [vmem:[#allocation7 + $0x34] sm:$0xf]
        %v313 = vld [vmem:[#allocation7 + $0x38] sm:$0xf]
        %v314 = vld [vmem:[#allocation7 + $0x3c] sm:$0xf]
        %v315 = vpack.c.bf16 %v297, %v297
        %v316 = vld [vmem:[#allocation8] sm:$0x1]
        %v317 = vlaneseq
        %v318 = vshrl.u32 %v317, 7
        %v319 = vsub.s32 0, %v318
        %v320 = vrot.slane %v316, %v319
        %v337 = vunpack.c.l.b16 %v299
        %v338 = vunpack.c.l.b16 %v300
        %v339 = vunpack.c.l.b16 %v301
        %v340 = vunpack.c.l.b16 %v302
        %v341 = vunpack.c.l.b16 %v303
        %v342 = vunpack.c.l.b16 %v304
        %v343 = vunpack.c.l.b16 %v305
        %v344 = vunpack.c.l.b16 %v306
        %v345 = vunpack.c.l.b16 %v307
        %v346 = vunpack.c.l.b16 %v308
        %v347 = vunpack.c.l.b16 %v309
        %v348 = vunpack.c.l.b16 %v310
        %v349 = vunpack.c.l.b16 %v311
        %v350 = vunpack.c.l.b16 %v312
        %v351 = vunpack.c.l.b16 %v313
        %v352 = vunpack.c.l.b16 %v314
        %v353 = vpack.c.b16 %v338, %v337
        %v354 = vpack.c.b16 %v340, %v339
        %v355 = vpack.c.b16 %v342, %v341
        %v356 = vpack.c.b16 %v344, %v343
        %v357 = vpack.c.b16 %v346, %v345
        %v358 = vpack.c.b16 %v348, %v347
        %v359 = vpack.c.b16 %v350, %v349
        %v360 = vpack.c.b16 %v352, %v351
        %369 = vmatprep.subr.bf16.mxu0 0
        %370 = vmatpush1.bf16.msra.mxu0 %v360
        %371 = vmatprep.subr.bf16.mxu0 0
        %372 = vmatpush1.bf16.msra.mxu0 %v359
        %373 = vmatprep.subr.bf16.mxu0 0
        %374 = vmatpush1.bf16.msra.mxu0 %v358
        %375 = vmatprep.subr.bf16.mxu0 0
        %376 = vmatpush1.bf16.msra.mxu0 %v357
        %377 = vmatprep.subr.bf16.mxu0 0
        %378 = vmatpush1.bf16.msra.mxu0 %v356
        %379 = vmatprep.subr.bf16.mxu0 0
        %380 = vmatpush1.bf16.msra.mxu0 %v355
        %381 = vmatprep.subr.bf16.mxu0 0
        %382 = vmatpush1.bf16.msra.mxu0 %v354
        %383 = vmatprep.subr.bf16.mxu0 0
        %384 = vmatpush1.bf16.msra.mxu0 %v353
        %385 = vmatprep.subr.bf16.mxu0 0
        %386 = vmatpush2.bf16.msra.mxu0 0
        %387 = vmatprep.subr.bf16.mxu0 0
        %388 = vmatpush2.bf16.msra.mxu0 0
        %389 = vmatprep.subr.bf16.mxu0 0
        %390 = vmatpush2.bf16.msra.mxu0 0
        %391 = vmatprep.subr.bf16.mxu0 0
        %392 = vmatpush2.bf16.msra.mxu0 0
        %393 = vmatprep.subr.bf16.mxu0 0
        %394 = vmatpush2.bf16.msra.mxu0 0
        %395 = vmatprep.subr.bf16.mxu0 0
        %396 = vmatpush2.bf16.msra.mxu0 0
        %397 = vmatprep.subr.bf16.mxu0 0
        %398 = vmatpush2.bf16.msra.mxu0 0
        %399 = vmatprep.subr.bf16.mxu0 0
        %400 = vmatpush2.bf16.msra.mxu0 0
        %401 = vmatprep.mubr.bf16.mxu0 0
        %402 = vmatmul.mubr.bf16.gmra.mxu0 %v315
        %v403 = vpop.f32.mrf.mxu0
        %v404 = vadd.f32 %v320, %v403
        %v405 = vpop.f32.mrf.mxu0
        %v406 = vpop.f32.mrf.mxu0
        %v407 = vpop.f32.mrf.mxu0
        %408 = vdwg.mxu0
        %v409 = vxor.u32 %v404, 2147483648
        %v410 = vmul.f32 %v409, 1.442695
        %v411 = vpow.pop %v410
        %v412 = vadd.f32 %v411, 1.0
        %v413 = vrcp.pop %v412
        %v414 = vmul.f32 1.0, %v413
        %v415 = vmul.f32 %v404, %v414
        %v416 = vlaneseq
        %v417 = vshrl.u32 %v416, 7
        %v418 = vsub.s32 0, %v417
        %v419 = vrot.slane %v298, %v418
        %v420 = vmul.f32 %v415, %v419
        %v421 = vlaneseq
        %v422 = vshrl.u32 %v421, 7
        %v423 = vsub.s32 1, %v422
        %v424 = vrot.slane %v298, %v423
        %v425 = vadd.f32 %v420, %v424
        %v426 = vld [vmem:[#allocation8 + $0x1] sm:$0x1]
        %v427 = vld [vmem:[#allocation8 + $0x2] sm:$0x1]
        %428 = vadd.xlane.f32.xlu0 %v425
        %v429 = vpop.xlane.xlu0 %428
        %v430 = vmul.f32 %v425, %v425
        %431 = vadd.xlane.f32.xlu0 %v430
        %v432 = vpop.xlane.xlu0 %431
        %v433 = vrcp.pop 32.0
        %v434 = vmul.f32 %v429, %v433
        %v435 = vmul.f32 %v432, %v433
        %v436 = vmul.f32 %v434, %v434
        %v437 = vsub.f32 %v435, %v436
        %v438 = vsub.f32 %v425, %v434
        %v439 = vadd.f32 %v437, 1e-06
        %v440 = vrsqrt.pop %v439
        %v441 = vmul.f32 %v438, %v440
        %v442 = vlaneseq
        %v443 = vshrl.u32 %v442, 7
        %v444 = vsub.s32 0, %v443
        %v445 = vrot.slane %v426, %v444
        %v446 = vmul.f32 %v441, %v445
        %v447 = vlaneseq
        %v448 = vshrl.u32 %v447, 7
        %v449 = vsub.s32 0, %v448
        %v450 = vrot.slane %v427, %v449
        %v451 = vadd.f32 %v446, %v450
        %s452 = scalar_lea.vmem [#allocation7], 64
        %v453 = vld [vmem:[%s452] sm:$0xf]
        %v454 = vld [vmem:[%s452 + $0x4] sm:$0xf]
        %v455 = vld [vmem:[%s452 + $0x8] sm:$0xf]
        %v456 = vld [vmem:[%s452 + $0xc] sm:$0xf]
        %v457 = vld [vmem:[%s452 + $0x10] sm:$0xf]
        %v458 = vld [vmem:[%s452 + $0x14] sm:$0xf]
        %v459 = vld [vmem:[%s452 + $0x18] sm:$0xf]
        %v460 = vld [vmem:[%s452 + $0x1c] sm:$0xf]
        %v461 = vld [vmem:[%s452 + $0x20] sm:$0xf]
        %v462 = vld [vmem:[%s452 + $0x24] sm:$0xf]
        %v463 = vld [vmem:[%s452 + $0x28] sm:$0xf]
        %v464 = vld [vmem:[%s452 + $0x2c] sm:$0xf]
        %v465 = vld [vmem:[%s452 + $0x30] sm:$0xf]
        %v466 = vld [vmem:[%s452 + $0x34] sm:$0xf]
        %v467 = vld [vmem:[%s452 + $0x38] sm:$0xf]
        %v468 = vld [vmem:[%s452 + $0x3c] sm:$0xf]
        %v469 = vpack.c.bf16 %v451, %v451
        %v470 = vld [vmem:[#allocation8 + $0x3] sm:$0x1]
        %v471 = vlaneseq
        %v472 = vshrl.u32 %v471, 7
        %v473 = vsub.s32 0, %v472
        %v474 = vrot.slane %v470, %v473
        %v491 = vunpack.c.l.b16 %v453
        %v492 = vunpack.c.l.b16 %v454
        %v493 = vunpack.c.l.b16 %v455
        %v494 = vunpack.c.l.b16 %v456
        %v495 = vunpack.c.l.b16 %v457
        %v496 = vunpack.c.l.b16 %v458
        %v497 = vunpack.c.l.b16 %v459
        %v498 = vunpack.c.l.b16 %v460
        %v499 = vunpack.c.l.b16 %v461
        %v500 = vunpack.c.l.b16 %v462
        %v501 = vunpack.c.l.b16 %v463
        %v502 = vunpack.c.l.b16 %v464
        %v503 = vunpack.c.l.b16 %v465
        %v504 = vunpack.c.l.b16 %v466
        %v505 = vunpack.c.l.b16 %v467
        %v506 = vunpack.c.l.b16 %v468
        %v507 = vpack.c.b16 %v492, %v491
        %v508 = vpack.c.b16 %v494, %v493
        %v509 = vpack.c.b16 %v496, %v495
        %v510 = vpack.c.b16 %v498, %v497
        %v511 = vpack.c.b16 %v500, %v499
        %v512 = vpack.c.b16 %v502, %v501
        %v513 = vpack.c.b16 %v504, %v503
        %v514 = vpack.c.b16 %v506, %v505
        %523 = vmatprep.subr.bf16.mxu0 0
        %524 = vmatpush1.bf16.msra.mxu0 %v514
        %525 = vmatprep.subr.bf16.mxu0 0
        %526 = vmatpush1.bf16.msra.mxu0 %v513
        %527 = vmatprep.subr.bf16.mxu0 0
        %528 = vmatpush1.bf16.msra.mxu0 %v512
        %529 = vmatprep.subr.bf16.mxu0 0
        %530 = vmatpush1.bf16.msra.mxu0 %v511
        %531 = vmatprep.subr.bf16.mxu0 0
        %532 = vmatpush1.bf16.msra.mxu0 %v510
        %533 = vmatprep.subr.bf16.mxu0 0
        %534 = vmatpush1.bf16.msra.mxu0 %v509
        %535 = vmatprep.subr.bf16.mxu0 0
        %536 = vmatpush1.bf16.msra.mxu0 %v508
        %537 = vmatprep.subr.bf16.mxu0 0
        %538 = vmatpush1.bf16.msra.mxu0 %v507
        %539 = vmatprep.subr.bf16.mxu0 0
        %540 = vmatpush2.bf16.msra.mxu0 0
        %541 = vmatprep.subr.bf16.mxu0 0
        %542 = vmatpush2.bf16.msra.mxu0 0
        %543 = vmatprep.subr.bf16.mxu0 0
        %544 = vmatpush2.bf16.msra.mxu0 0
        %545 = vmatprep.subr.bf16.mxu0 0
        %546 = vmatpush2.bf16.msra.mxu0 0
        %547 = vmatprep.subr.bf16.mxu0 0
        %548 = vmatpush2.bf16.msra.mxu0 0
        %549 = vmatprep.subr.bf16.mxu0 0
        %550 = vmatpush2.bf16.msra.mxu0 0
        %551 = vmatprep.subr.bf16.mxu0 0
        %552 = vmatpush2.bf16.msra.mxu0 0
        %553 = vmatprep.subr.bf16.mxu0 0
        %554 = vmatpush2.bf16.msra.mxu0 0
        %555 = vmatprep.mubr.bf16.mxu0 0
        %556 = vmatmul.mubr.bf16.gmra.mxu0 %v469
        %v557 = vpop.f32.mrf.mxu0
        %v558 = vadd.f32 %v474, %v557
        %v559 = vpop.f32.mrf.mxu0
        %v560 = vpop.f32.mrf.mxu0
        %v561 = vpop.f32.mrf.mxu0
        %562 = vdwg.mxu0
        %s563 = scalar_lea.vmem [#allocation7], 128
        %v564 = vld [vmem:[%s563] sm:$0xf]
        %v565 = vld [vmem:[%s563 + $0x4] sm:$0xf]
        %v566 = vld [vmem:[%s563 + $0x8] sm:$0xf]
        %v567 = vld [vmem:[%s563 + $0xc] sm:$0xf]
        %v568 = vld [vmem:[%s563 + $0x10] sm:$0xf]
        %v569 = vld [vmem:[%s563 + $0x14] sm:$0xf]
        %v570 = vld [vmem:[%s563 + $0x18] sm:$0xf]
        %v571 = vld [vmem:[%s563 + $0x1c] sm:$0xf]
        %v572 = vld [vmem:[%s563 + $0x20] sm:$0xf]
        %v573 = vld [vmem:[%s563 + $0x24] sm:$0xf]
        %v574 = vld [vmem:[%s563 + $0x28] sm:$0xf]
        %v575 = vld [vmem:[%s563 + $0x2c] sm:$0xf]
        %v576 = vld [vmem:[%s563 + $0x30] sm:$0xf]
        %v577 = vld [vmem:[%s563 + $0x34] sm:$0xf]
        %v578 = vld [vmem:[%s563 + $0x38] sm:$0xf]
        %v579 = vld [vmem:[%s563 + $0x3c] sm:$0xf]
        %v580 = vld [vmem:[#allocation8 + $0x4] sm:$0x1]
        %v581 = vlaneseq
        %v582 = vshrl.u32 %v581, 7
        %v583 = vsub.s32 0, %v582
        %v584 = vrot.slane %v580, %v583
        %v601 = vunpack.c.l.b16 %v564
        %v602 = vunpack.c.l.b16 %v565
        %v603 = vunpack.c.l.b16 %v566
        %v604 = vunpack.c.l.b16 %v567
        %v605 = vunpack.c.l.b16 %v568
        %v606 = vunpack.c.l.b16 %v569
        %v607 = vunpack.c.l.b16 %v570
        %v608 = vunpack.c.l.b16 %v571
        %v609 = vunpack.c.l.b16 %v572
        %v610 = vunpack.c.l.b16 %v573
        %v611 = vunpack.c.l.b16 %v574
        %v612 = vunpack.c.l.b16 %v575
        %v613 = vunpack.c.l.b16 %v576
        %v614 = vunpack.c.l.b16 %v577
        %v615 = vunpack.c.l.b16 %v578
        %v616 = vunpack.c.l.b16 %v579
        %v617 = vpack.c.b16 %v602, %v601
        %v618 = vpack.c.b16 %v604, %v603
        %v619 = vpack.c.b16 %v606, %v605
        %v620 = vpack.c.b16 %v608, %v607
        %v621 = vpack.c.b16 %v610, %v609
        %v622 = vpack.c.b16 %v612, %v611
        %v623 = vpack.c.b16 %v614, %v613
        %v624 = vpack.c.b16 %v616, %v615
        %633 = vmatprep.subr.bf16.mxu0 0
        %634 = vmatpush1.bf16.msra.mxu0 %v624
        %635 = vmatprep.subr.bf16.mxu0 0
        %636 = vmatpush1.bf16.msra.mxu0 %v623
        %637 = vmatprep.subr.bf16.mxu0 0
        %638 = vmatpush1.bf16.msra.mxu0 %v622
        %639 = vmatprep.subr.bf16.mxu0 0
        %640 = vmatpush1.bf16.msra.mxu0 %v621
        %641 = vmatprep.subr.bf16.mxu0 0
        %642 = vmatpush1.bf16.msra.mxu0 %v620
        %643 = vmatprep.subr.bf16.mxu0 0
        %644 = vmatpush1.bf16.msra.mxu0 %v619
        %645 = vmatprep.subr.bf16.mxu0 0
        %646 = vmatpush1.bf16.msra.mxu0 %v618
        %647 = vmatprep.subr.bf16.mxu0 0
        %648 = vmatpush1.bf16.msra.mxu0 %v617
        %649 = vmatprep.subr.bf16.mxu0 0
        %650 = vmatpush2.bf16.msra.mxu0 0
        %651 = vmatprep.subr.bf16.mxu0 0
        %652 = vmatpush2.bf16.msra.mxu0 0
        %653 = vmatprep.subr.bf16.mxu0 0
        %654 = vmatpush2.bf16.msra.mxu0 0
        %655 = vmatprep.subr.bf16.mxu0 0
        %656 = vmatpush2.bf16.msra.mxu0 0
        %657 = vmatprep.subr.bf16.mxu0 0
        %658 = vmatpush2.bf16.msra.mxu0 0
        %659 = vmatprep.subr.bf16.mxu0 0
        %660 = vmatpush2.bf16.msra.mxu0 0
        %661 = vmatprep.subr.bf16.mxu0 0
        %662 = vmatpush2.bf16.msra.mxu0 0
        %663 = vmatprep.subr.bf16.mxu0 0
        %664 = vmatpush2.bf16.msra.mxu0 0
        %665 = vmatprep.mubr.bf16.mxu0 0
        %666 = vmatmul.mubr.bf16.gmra.mxu0 %v469
        %v667 = vpop.f32.mrf.mxu0
        %v668 = vadd.f32 %v584, %v667
        %v669 = vpop.f32.mrf.mxu0
        %v670 = vpop.f32.mrf.mxu0
        %v671 = vpop.f32.mrf.mxu0
        %672 = vdwg.mxu0
        %v673 = vxor.u32 %v668, 2147483648
        %v674 = vmul.f32 %v673, 1.442695
        %v675 = vpow.pop %v674
        %v676 = vadd.f32 %v675, 1.0
        %v677 = vrcp.pop %v676
        %v678 = vmul.f32 1.0, %v677
        %v679 = vmul.f32 %v668, %v678
        %s680 = scalar_lea.vmem [#allocation7], 192
        %v681 = vld [vmem:[%s680] sm:$0xf]
        %v682 = vld [vmem:[%s680 + $0x4] sm:$0xf]
        %v683 = vld [vmem:[%s680 + $0x8] sm:$0xf]
        %v684 = vld [vmem:[%s680 + $0xc] sm:$0xf]
        %v685 = vld [vmem:[%s680 + $0x10] sm:$0xf]
        %v686 = vld [vmem:[%s680 + $0x14] sm:$0xf]
        %v687 = vld [vmem:[%s680 + $0x18] sm:$0xf]
        %v688 = vld [vmem:[%s680 + $0x1c] sm:$0xf]
        %v689 = vld [vmem:[%s680 + $0x20] sm:$0xf]
        %v690 = vld [vmem:[%s680 + $0x24] sm:$0xf]
        %v691 = vld [vmem:[%s680 + $0x28] sm:$0xf]
        %v692 = vld [vmem:[%s680 + $0x2c] sm:$0xf]
        %v693 = vld [vmem:[%s680 + $0x30] sm:$0xf]
        %v694 = vld [vmem:[%s680 + $0x34] sm:$0xf]
        %v695 = vld [vmem:[%s680 + $0x38] sm:$0xf]
        %v696 = vld [vmem:[%s680 + $0x3c] sm:$0xf]
        %v697 = vpack.c.bf16 %v679, %v679
        %v698 = vld [vmem:[#allocation8 + $0x5] sm:$0x1]
        %v699 = vlaneseq
        %v700 = vshrl.u32 %v699, 7
        %v701 = vsub.s32 0, %v700
        %v702 = vrot.slane %v698, %v701
        %v719 = vunpack.c.l.b16 %v681
        %v720 = vunpack.c.l.b16 %v682
        %v721 = vunpack.c.l.b16 %v683
        %v722 = vunpack.c.l.b16 %v684
        %v723 = vunpack.c.l.b16 %v685
        %v724 = vunpack.c.l.b16 %v686
        %v725 = vunpack.c.l.b16 %v687
        %v726 = vunpack.c.l.b16 %v688
        %v727 = vunpack.c.l.b16 %v689
        %v728 = vunpack.c.l.b16 %v690
        %v729 = vunpack.c.l.b16 %v691
        %v730 = vunpack.c.l.b16 %v692
        %v731 = vunpack.c.l.b16 %v693
        %v732 = vunpack.c.l.b16 %v694
        %v733 = vunpack.c.l.b16 %v695
        %v734 = vunpack.c.l.b16 %v696
        %v735 = vpack.c.b16 %v720, %v719
        %v736 = vpack.c.b16 %v722, %v721
        %v737 = vpack.c.b16 %v724, %v723
        %v738 = vpack.c.b16 %v726, %v725
        %v739 = vpack.c.b16 %v728, %v727
        %v740 = vpack.c.b16 %v730, %v729
        %v741 = vpack.c.b16 %v732, %v731
        %v742 = vpack.c.b16 %v734, %v733
        %751 = vmatprep.subr.bf16.mxu0 0
        %752 = vmatpush1.bf16.msra.mxu0 %v742
        %753 = vmatprep.subr.bf16.mxu0 0
        %754 = vmatpush1.bf16.msra.mxu0 %v741
        %755 = vmatprep.subr.bf16.mxu0 0
        %756 = vmatpush1.bf16.msra.mxu0 %v740
        %757 = vmatprep.subr.bf16.mxu0 0
        %758 = vmatpush1.bf16.msra.mxu0 %v739
        %759 = vmatprep.subr.bf16.mxu0 0
        %760 = vmatpush1.bf16.msra.mxu0 %v738
        %761 = vmatprep.subr.bf16.mxu0 0
        %762 = vmatpush1.bf16.msra.mxu0 %v737
        %763 = vmatprep.subr.bf16.mxu0 0
        %764 = vmatpush1.bf16.msra.mxu0 %v736
        %765 = vmatprep.subr.bf16.mxu0 0
        %766 = vmatpush1.bf16.msra.mxu0 %v735
        %767 = vmatprep.subr.bf16.mxu0 0
        %768 = vmatpush2.bf16.msra.mxu0 0
        %769 = vmatprep.subr.bf16.mxu0 0
        %770 = vmatpush2.bf16.msra.mxu0 0
        %771 = vmatprep.subr.bf16.mxu0 0
        %772 = vmatpush2.bf16.msra.mxu0 0
        %773 = vmatprep.subr.bf16.mxu0 0
        %774 = vmatpush2.bf16.msra.mxu0 0
        %775 = vmatprep.subr.bf16.mxu0 0
        %776 = vmatpush2.bf16.msra.mxu0 0
        %777 = vmatprep.subr.bf16.mxu0 0
        %778 = vmatpush2.bf16.msra.mxu0 0
        %779 = vmatprep.subr.bf16.mxu0 0
        %780 = vmatpush2.bf16.msra.mxu0 0
        %781 = vmatprep.subr.bf16.mxu0 0
        %782 = vmatpush2.bf16.msra.mxu0 0
        %783 = vmatprep.mubr.bf16.mxu0 0
        %784 = vmatmul.mubr.bf16.gmra.mxu0 %v697
        %v785 = vpop.f32.mrf.mxu0
        %v786 = vadd.f32 %v702, %v785
        %v787 = vpop.f32.mrf.mxu0
        %v788 = vpop.f32.mrf.mxu0
        %v789 = vpop.f32.mrf.mxu0
        %790 = vdwg.mxu0
        %v791 = vxor.u32 %v786, 2147483648
        %v792 = vmul.f32 %v791, 1.442695
        %v793 = vpow.pop %v792
        %v794 = vadd.f32 %v793, 1.0
        %v795 = vrcp.pop %v794
        %v796 = vmul.f32 1.0, %v795
        %v797 = vmul.f32 %v786, %v796
        %s798 = scalar_lea.vmem [#allocation7], 256
        %v799 = vld [vmem:[%s798] sm:$0xf]
        %v800 = vld [vmem:[%s798 + $0x4] sm:$0xf]
        %v801 = vld [vmem:[%s798 + $0x8] sm:$0xf]
        %v802 = vld [vmem:[%s798 + $0xc] sm:$0xf]
        %v803 = vld [vmem:[%s798 + $0x10] sm:$0xf]
        %v804 = vld [vmem:[%s798 + $0x14] sm:$0xf]
        %v805 = vld [vmem:[%s798 + $0x18] sm:$0xf]
        %v806 = vld [vmem:[%s798 + $0x1c] sm:$0xf]
        %v807 = vld [vmem:[%s798 + $0x20] sm:$0xf]
        %v808 = vld [vmem:[%s798 + $0x24] sm:$0xf]
        %v809 = vld [vmem:[%s798 + $0x28] sm:$0xf]
        %v810 = vld [vmem:[%s798 + $0x2c] sm:$0xf]
        %v811 = vld [vmem:[%s798 + $0x30] sm:$0xf]
        %v812 = vld [vmem:[%s798 + $0x34] sm:$0xf]
        %v813 = vld [vmem:[%s798 + $0x38] sm:$0xf]
        %v814 = vld [vmem:[%s798 + $0x3c] sm:$0xf]
        %v815 = vpack.c.bf16 %v797, %v797
        %v816 = vld [vmem:[#allocation8 + $0x6] sm:$0x1]
        %v817 = vlaneseq
        %v818 = vshrl.u32 %v817, 7
        %v819 = vsub.s32 0, %v818
        %v820 = vrot.slane %v816, %v819
        %v837 = vunpack.c.l.b16 %v799
        %v838 = vunpack.c.l.b16 %v800
        %v839 = vunpack.c.l.b16 %v801
        %v840 = vunpack.c.l.b16 %v802
        %v841 = vunpack.c.l.b16 %v803
        %v842 = vunpack.c.l.b16 %v804
        %v843 = vunpack.c.l.b16 %v805
        %v844 = vunpack.c.l.b16 %v806
        %v845 = vunpack.c.l.b16 %v807
        %v846 = vunpack.c.l.b16 %v808
        %v847 = vunpack.c.l.b16 %v809
        %v848 = vunpack.c.l.b16 %v810
        %v849 = vunpack.c.l.b16 %v811
        %v850 = vunpack.c.l.b16 %v812
        %v851 = vunpack.c.l.b16 %v813
        %v852 = vunpack.c.l.b16 %v814
        %v853 = vpack.c.b16 %v838, %v837
        %v854 = vpack.c.b16 %v840, %v839
        %v855 = vpack.c.b16 %v842, %v841
        %v856 = vpack.c.b16 %v844, %v843
        %v857 = vpack.c.b16 %v846, %v845
        %v858 = vpack.c.b16 %v848, %v847
        %v859 = vpack.c.b16 %v850, %v849
        %v860 = vpack.c.b16 %v852, %v851
        %869 = vmatprep.subr.bf16.mxu0 0
        %870 = vmatpush1.bf16.msra.mxu0 %v860
        %871 = vmatprep.subr.bf16.mxu0 0
        %872 = vmatpush1.bf16.msra.mxu0 %v859
        %873 = vmatprep.subr.bf16.mxu0 0
        %874 = vmatpush1.bf16.msra.mxu0 %v858
        %875 = vmatprep.subr.bf16.mxu0 0
        %876 = vmatpush1.bf16.msra.mxu0 %v857
        %877 = vmatprep.subr.bf16.mxu0 0
        %878 = vmatpush1.bf16.msra.mxu0 %v856
        %879 = vmatprep.subr.bf16.mxu0 0
        %880 = vmatpush1.bf16.msra.mxu0 %v855
        %881 = vmatprep.subr.bf16.mxu0 0
        %882 = vmatpush1.bf16.msra.mxu0 %v854
        %883 = vmatprep.subr.bf16.mxu0 0
        %884 = vmatpush1.bf16.msra.mxu0 %v853
        %885 = vmatprep.subr.bf16.mxu0 0
        %886 = vmatpush2.bf16.msra.mxu0 0
        %887 = vmatprep.subr.bf16.mxu0 0
        %888 = vmatpush2.bf16.msra.mxu0 0
        %889 = vmatprep.subr.bf16.mxu0 0
        %890 = vmatpush2.bf16.msra.mxu0 0
        %891 = vmatprep.subr.bf16.mxu0 0
        %892 = vmatpush2.bf16.msra.mxu0 0
        %893 = vmatprep.subr.bf16.mxu0 0
        %894 = vmatpush2.bf16.msra.mxu0 0
        %895 = vmatprep.subr.bf16.mxu0 0
        %896 = vmatpush2.bf16.msra.mxu0 0
        %897 = vmatprep.subr.bf16.mxu0 0
        %898 = vmatpush2.bf16.msra.mxu0 0
        %899 = vmatprep.subr.bf16.mxu0 0
        %900 = vmatpush2.bf16.msra.mxu0 0
        %901 = vmatprep.mubr.bf16.mxu0 0
        %902 = vmatmul.mubr.bf16.gmra.mxu0 %v815
        %v903 = vpop.f32.mrf.mxu0
        %v904 = vadd.f32 %v820, %v903
        %v905 = vpop.f32.mrf.mxu0
        %v906 = vpop.f32.mrf.mxu0
        %v907 = vpop.f32.mrf.mxu0
        %908 = vdwg.mxu0
        %v909 = vxor.u32 %v904, 2147483648
        %v910 = vmul.f32 %v909, 1.442695
        %v911 = vpow.pop %v910
        %v912 = vadd.f32 %v911, 1.0
        %v913 = vrcp.pop %v912
        %v914 = vmul.f32 1.0, %v913
        %v915 = vmul.f32 %v904, %v914
        %v916 = vld [vmem:[#allocation8 + $0x7] sm:$0x1]
        %v917 = vlaneseq
        %v918 = vshrl.u32 %v917, 7
        %v919 = vsub.s32 0, %v918
        %v920 = vrot.slane %v916, %v919
        %v921 = vmul.f32 %v915, %v920
        %v922 = vadd.f32 %v558, %v921
        %v923 = vld [vmem:[#allocation8 + $0x8] sm:$0x1]
        %v924 = vld [vmem:[#allocation8 + $0x9] sm:$0x1]
        %925 = vadd.xlane.f32.xlu0 %v922
        %v926 = vpop.xlane.xlu0 %925
        %v927 = vmul.f32 %v922, %v922
        %928 = vadd.xlane.f32.xlu0 %v927
        %v929 = vpop.xlane.xlu0 %928
        %v930 = vmul.f32 %v926, %v433
        %v931 = vmul.f32 %v929, %v433
        %v932 = vmul.f32 %v930, %v930
        %v933 = vsub.f32 %v931, %v932
        %v934 = vsub.f32 %v922, %v930
        %v935 = vadd.f32 %v933, 1e-06
        %v936 = vrsqrt.pop %v935
        %v937 = vmul.f32 %v934, %v936
        %v938 = vlaneseq
        %v939 = vshrl.u32 %v938, 7
        %v940 = vsub.s32 0, %v939
        %v941 = vrot.slane %v923, %v940
        %v942 = vmul.f32 %v937, %v941
        %v943 = vlaneseq
        %v944 = vshrl.u32 %v943, 7
        %v945 = vsub.s32 0, %v944
        %v946 = vrot.slane %v924, %v945
        %v947 = vadd.f32 %v942, %v946
        %s948 = scalar_lea.vmem [#allocation7], 320
        %v949 = vld [vmem:[%s948] sm:$0xf]
        %v950 = vld [vmem:[%s948 + $0x4] sm:$0xf]
        %v951 = vld [vmem:[%s948 + $0x8] sm:$0xf]
        %v952 = vld [vmem:[%s948 + $0xc] sm:$0xf]
        %v953 = vld [vmem:[%s948 + $0x10] sm:$0xf]
        %v954 = vld [vmem:[%s948 + $0x14] sm:$0xf]
        %v955 = vld [vmem:[%s948 + $0x18] sm:$0xf]
        %v956 = vld [vmem:[%s948 + $0x1c] sm:$0xf]
        %v957 = vld [vmem:[%s948 + $0x20] sm:$0xf]
        %v958 = vld [vmem:[%s948 + $0x24] sm:$0xf]
        %v959 = vld [vmem:[%s948 + $0x28] sm:$0xf]
        %v960 = vld [vmem:[%s948 + $0x2c] sm:$0xf]
        %v961 = vld [vmem:[%s948 + $0x30] sm:$0xf]
        %v962 = vld [vmem:[%s948 + $0x34] sm:$0xf]
        %v963 = vld [vmem:[%s948 + $0x38] sm:$0xf]
        %v964 = vld [vmem:[%s948 + $0x3c] sm:$0xf]
        %v965 = vpack.c.bf16 %v947, %v947
        %v966 = vld [vmem:[#allocation8 + $0xa] sm:$0x1]
        %v967 = vlaneseq
        %v968 = vshrl.u32 %v967, 7
        %v969 = vsub.s32 0, %v968
        %v970 = vrot.slane %v966, %v969
        %v987 = vunpack.c.l.b16 %v949
        %v988 = vunpack.c.l.b16 %v950
        %v989 = vunpack.c.l.b16 %v951
        %v990 = vunpack.c.l.b16 %v952
        %v991 = vunpack.c.l.b16 %v953
        %v992 = vunpack.c.l.b16 %v954
        %v993 = vunpack.c.l.b16 %v955
        %v994 = vunpack.c.l.b16 %v956
        %v995 = vunpack.c.l.b16 %v957
        %v996 = vunpack.c.l.b16 %v958
        %v997 = vunpack.c.l.b16 %v959
        %v998 = vunpack.c.l.b16 %v960
        %v999 = vunpack.c.l.b16 %v961
        %v1000 = vunpack.c.l.b16 %v962
        %v1001 = vunpack.c.l.b16 %v963
        %v1002 = vunpack.c.l.b16 %v964
        %v1003 = vpack.c.b16 %v988, %v987
        %v1004 = vpack.c.b16 %v990, %v989
        %v1005 = vpack.c.b16 %v992, %v991
        %v1006 = vpack.c.b16 %v994, %v993
        %v1007 = vpack.c.b16 %v996, %v995
        %v1008 = vpack.c.b16 %v998, %v997
        %v1009 = vpack.c.b16 %v1000, %v999
        %v1010 = vpack.c.b16 %v1002, %v1001
        %1019 = vmatprep.subr.bf16.mxu0 0
        %1020 = vmatpush1.bf16.msra.mxu0 %v1010
        %1021 = vmatprep.subr.bf16.mxu0 0
        %1022 = vmatpush1.bf16.msra.mxu0 %v1009
        %1023 = vmatprep.subr.bf16.mxu0 0
        %1024 = vmatpush1.bf16.msra.mxu0 %v1008
        %1025 = vmatprep.subr.bf16.mxu0 0
        %1026 = vmatpush1.bf16.msra.mxu0 %v1007
        %1027 = vmatprep.subr.bf16.mxu0 0
        %1028 = vmatpush1.bf16.msra.mxu0 %v1006
        %1029 = vmatprep.subr.bf16.mxu0 0
        %1030 = vmatpush1.bf16.msra.mxu0 %v1005
        %1031 = vmatprep.subr.bf16.mxu0 0
        %1032 = vmatpush1.bf16.msra.mxu0 %v1004
        %1033 = vmatprep.subr.bf16.mxu0 0
        %1034 = vmatpush1.bf16.msra.mxu0 %v1003
        %1035 = vmatprep.subr.bf16.mxu0 0
        %1036 = vmatpush2.bf16.msra.mxu0 0
        %1037 = vmatprep.subr.bf16.mxu0 0
        %1038 = vmatpush2.bf16.msra.mxu0 0
        %1039 = vmatprep.subr.bf16.mxu0 0
        %1040 = vmatpush2.bf16.msra.mxu0 0
        %1041 = vmatprep.subr.bf16.mxu0 0
        %1042 = vmatpush2.bf16.msra.mxu0 0
        %1043 = vmatprep.subr.bf16.mxu0 0
        %1044 = vmatpush2.bf16.msra.mxu0 0
        %1045 = vmatprep.subr.bf16.mxu0 0
        %1046 = vmatpush2.bf16.msra.mxu0 0
        %1047 = vmatprep.subr.bf16.mxu0 0
        %1048 = vmatpush2.bf16.msra.mxu0 0
        %1049 = vmatprep.subr.bf16.mxu0 0
        %1050 = vmatpush2.bf16.msra.mxu0 0
        %1051 = vmatprep.mubr.bf16.mxu0 0
        %1052 = vmatmul.mubr.bf16.gmra.mxu0 %v965
        %v1053 = vpop.f32.mrf.mxu0
        %v1054 = vadd.f32 %v970, %v1053
        %v1055 = vpop.f32.mrf.mxu0
        %v1056 = vpop.f32.mrf.mxu0
        %v1057 = vpop.f32.mrf.mxu0
        %1058 = vdwg.mxu0
        %s1059 = scalar_lea.vmem [#allocation7], 384
        %v1060 = vld [vmem:[%s1059] sm:$0xf]
        %v1061 = vld [vmem:[%s1059 + $0x4] sm:$0xf]
        %v1062 = vld [vmem:[%s1059 + $0x8] sm:$0xf]
        %v1063 = vld [vmem:[%s1059 + $0xc] sm:$0xf]
        %v1064 = vld [vmem:[%s1059 + $0x10] sm:$0xf]
        %v1065 = vld [vmem:[%s1059 + $0x14] sm:$0xf]
        %v1066 = vld [vmem:[%s1059 + $0x18] sm:$0xf]
        %v1067 = vld [vmem:[%s1059 + $0x1c] sm:$0xf]
        %v1068 = vld [vmem:[%s1059 + $0x20] sm:$0xf]
        %v1069 = vld [vmem:[%s1059 + $0x24] sm:$0xf]
        %v1070 = vld [vmem:[%s1059 + $0x28] sm:$0xf]
        %v1071 = vld [vmem:[%s1059 + $0x2c] sm:$0xf]
        %v1072 = vld [vmem:[%s1059 + $0x30] sm:$0xf]
        %v1073 = vld [vmem:[%s1059 + $0x34] sm:$0xf]
        %v1074 = vld [vmem:[%s1059 + $0x38] sm:$0xf]
        %v1075 = vld [vmem:[%s1059 + $0x3c] sm:$0xf]
        %v1076 = vld [vmem:[#allocation8 + $0xb] sm:$0x1]
        %v1077 = vlaneseq
        %v1078 = vshrl.u32 %v1077, 7
        %v1079 = vsub.s32 0, %v1078
        %v1080 = vrot.slane %v1076, %v1079
        %v1097 = vunpack.c.l.b16 %v1060
        %v1098 = vunpack.c.l.b16 %v1061
        %v1099 = vunpack.c.l.b16 %v1062
        %v1100 = vunpack.c.l.b16 %v1063
        %v1101 = vunpack.c.l.b16 %v1064
        %v1102 = vunpack.c.l.b16 %v1065
        %v1103 = vunpack.c.l.b16 %v1066
        %v1104 = vunpack.c.l.b16 %v1067
        %v1105 = vunpack.c.l.b16 %v1068
        %v1106 = vunpack.c.l.b16 %v1069
        %v1107 = vunpack.c.l.b16 %v1070
        %v1108 = vunpack.c.l.b16 %v1071
        %v1109 = vunpack.c.l.b16 %v1072
        %v1110 = vunpack.c.l.b16 %v1073
        %v1111 = vunpack.c.l.b16 %v1074
        %v1112 = vunpack.c.l.b16 %v1075
        %v1113 = vpack.c.b16 %v1098, %v1097
        %v1114 = vpack.c.b16 %v1100, %v1099
        %v1115 = vpack.c.b16 %v1102, %v1101
        %v1116 = vpack.c.b16 %v1104, %v1103
        %v1117 = vpack.c.b16 %v1106, %v1105
        %v1118 = vpack.c.b16 %v1108, %v1107
        %v1119 = vpack.c.b16 %v1110, %v1109
        %v1120 = vpack.c.b16 %v1112, %v1111
        %1129 = vmatprep.subr.bf16.mxu0 0
        %1130 = vmatpush1.bf16.msra.mxu0 %v1120
        %1131 = vmatprep.subr.bf16.mxu0 0
        %1132 = vmatpush1.bf16.msra.mxu0 %v1119
        %1133 = vmatprep.subr.bf16.mxu0 0
        %1134 = vmatpush1.bf16.msra.mxu0 %v1118
        %1135 = vmatprep.subr.bf16.mxu0 0
        %1136 = vmatpush1.bf16.msra.mxu0 %v1117
        %1137 = vmatprep.subr.bf16.mxu0 0
        %1138 = vmatpush1.bf16.msra.mxu0 %v1116
        %1139 = vmatprep.subr.bf16.mxu0 0
        %1140 = vmatpush1.bf16.msra.mxu0 %v1115
        %1141 = vmatprep.subr.bf16.mxu0 0
        %1142 = vmatpush1.bf16.msra.mxu0 %v1114
        %1143 = vmatprep.subr.bf16.mxu0 0
        %1144 = vmatpush1.bf16.msra.mxu0 %v1113
        %1145 = vmatprep.subr.bf16.mxu0 0
        %1146 = vmatpush2.bf16.msra.mxu0 0
        %1147 = vmatprep.subr.bf16.mxu0 0
        %1148 = vmatpush2.bf16.msra.mxu0 0
        %1149 = vmatprep.subr.bf16.mxu0 0
        %1150 = vmatpush2.bf16.msra.mxu0 0
        %1151 = vmatprep.subr.bf16.mxu0 0
        %1152 = vmatpush2.bf16.msra.mxu0 0
        %1153 = vmatprep.subr.bf16.mxu0 0
        %1154 = vmatpush2.bf16.msra.mxu0 0
        %1155 = vmatprep.subr.bf16.mxu0 0
        %1156 = vmatpush2.bf16.msra.mxu0 0
        %1157 = vmatprep.subr.bf16.mxu0 0
        %1158 = vmatpush2.bf16.msra.mxu0 0
        %1159 = vmatprep.subr.bf16.mxu0 0
        %1160 = vmatpush2.bf16.msra.mxu0 0
        %1161 = vmatprep.mubr.bf16.mxu0 0
        %1162 = vmatmul.mubr.bf16.gmra.mxu0 %v965
        %v1163 = vpop.f32.mrf.mxu0
        %v1164 = vadd.f32 %v1080, %v1163
        %v1165 = vpop.f32.mrf.mxu0
        %v1166 = vpop.f32.mrf.mxu0
        %v1167 = vpop.f32.mrf.mxu0
        %1168 = vdwg.mxu0
        %v1169 = vxor.u32 %v1164, 2147483648
        %v1170 = vmul.f32 %v1169, 1.442695
        %v1171 = vpow.pop %v1170
        %v1172 = vadd.f32 %v1171, 1.0
        %v1173 = vrcp.pop %v1172
        %v1174 = vmul.f32 1.0, %v1173
        %v1175 = vmul.f32 %v1164, %v1174
        %s1176 = scalar_lea.vmem [#allocation7], 448
        %v1177 = vld [vmem:[%s1176] sm:$0xf]
        %v1178 = vld [vmem:[%s1176 + $0x4] sm:$0xf]
        %v1179 = vld [vmem:[%s1176 + $0x8] sm:$0xf]
        %v1180 = vld [vmem:[%s1176 + $0xc] sm:$0xf]
        %v1181 = vld [vmem:[%s1176 + $0x10] sm:$0xf]
        %v1182 = vld [vmem:[%s1176 + $0x14] sm:$0xf]
        %v1183 = vld [vmem:[%s1176 + $0x18] sm:$0xf]
        %v1184 = vld [vmem:[%s1176 + $0x1c] sm:$0xf]
        %v1185 = vld [vmem:[%s1176 + $0x20] sm:$0xf]
        %v1186 = vld [vmem:[%s1176 + $0x24] sm:$0xf]
        %v1187 = vld [vmem:[%s1176 + $0x28] sm:$0xf]
        %v1188 = vld [vmem:[%s1176 + $0x2c] sm:$0xf]
        %v1189 = vld [vmem:[%s1176 + $0x30] sm:$0xf]
        %v1190 = vld [vmem:[%s1176 + $0x34] sm:$0xf]
        %v1191 = vld [vmem:[%s1176 + $0x38] sm:$0xf]
        %v1192 = vld [vmem:[%s1176 + $0x3c] sm:$0xf]
        %v1193 = vpack.c.bf16 %v1175, %v1175
        %v1194 = vld [vmem:[#allocation8 + $0xc] sm:$0x1]
        %v1195 = vlaneseq
        %v1196 = vshrl.u32 %v1195, 7
        %v1197 = vsub.s32 0, %v1196
        %v1198 = vrot.slane %v1194, %v1197
        %v1215 = vunpack.c.l.b16 %v1177
        %v1216 = vunpack.c.l.b16 %v1178
        %v1217 = vunpack.c.l.b16 %v1179
        %v1218 = vunpack.c.l.b16 %v1180
        %v1219 = vunpack.c.l.b16 %v1181
        %v1220 = vunpack.c.l.b16 %v1182
        %v1221 = vunpack.c.l.b16 %v1183
        %v1222 = vunpack.c.l.b16 %v1184
        %v1223 = vunpack.c.l.b16 %v1185
        %v1224 = vunpack.c.l.b16 %v1186
        %v1225 = vunpack.c.l.b16 %v1187
        %v1226 = vunpack.c.l.b16 %v1188
        %v1227 = vunpack.c.l.b16 %v1189
        %v1228 = vunpack.c.l.b16 %v1190
        %v1229 = vunpack.c.l.b16 %v1191
        %v1230 = vunpack.c.l.b16 %v1192
        %v1231 = vpack.c.b16 %v1216, %v1215
        %v1232 = vpack.c.b16 %v1218, %v1217
        %v1233 = vpack.c.b16 %v1220, %v1219
        %v1234 = vpack.c.b16 %v1222, %v1221
        %v1235 = vpack.c.b16 %v1224, %v1223
        %v1236 = vpack.c.b16 %v1226, %v1225
        %v1237 = vpack.c.b16 %v1228, %v1227
        %v1238 = vpack.c.b16 %v1230, %v1229
        %1247 = vmatprep.subr.bf16.mxu0 0
        %1248 = vmatpush1.bf16.msra.mxu0 %v1238
        %1249 = vmatprep.subr.bf16.mxu0 0
        %1250 = vmatpush1.bf16.msra.mxu0 %v1237
        %1251 = vmatprep.subr.bf16.mxu0 0
        %1252 = vmatpush1.bf16.msra.mxu0 %v1236
        %1253 = vmatprep.subr.bf16.mxu0 0
        %1254 = vmatpush1.bf16.msra.mxu0 %v1235
        %1255 = vmatprep.subr.bf16.mxu0 0
        %1256 = vmatpush1.bf16.msra.mxu0 %v1234
        %1257 = vmatprep.subr.bf16.mxu0 0
        %1258 = vmatpush1.bf16.msra.mxu0 %v1233
        %1259 = vmatprep.subr.bf16.mxu0 0
        %1260 = vmatpush1.bf16.msra.mxu0 %v1232
        %1261 = vmatprep.subr.bf16.mxu0 0
        %1262 = vmatpush1.bf16.msra.mxu0 %v1231
        %1263 = vmatprep.subr.bf16.mxu0 0
        %1264 = vmatpush2.bf16.msra.mxu0 0
        %1265 = vmatprep.subr.bf16.mxu0 0
        %1266 = vmatpush2.bf16.msra.mxu0 0
        %1267 = vmatprep.subr.bf16.mxu0 0
        %1268 = vmatpush2.bf16.msra.mxu0 0
        %1269 = vmatprep.subr.bf16.mxu0 0
        %1270 = vmatpush2.bf16.msra.mxu0 0
        %1271 = vmatprep.subr.bf16.mxu0 0
        %1272 = vmatpush2.bf16.msra.mxu0 0
        %1273 = vmatprep.subr.bf16.mxu0 0
        %1274 = vmatpush2.bf16.msra.mxu0 0
        %1275 = vmatprep.subr.bf16.mxu0 0
        %1276 = vmatpush2.bf16.msra.mxu0 0
        %1277 = vmatprep.subr.bf16.mxu0 0
        %1278 = vmatpush2.bf16.msra.mxu0 0
        %1279 = vmatprep.mubr.bf16.mxu0 0
        %1280 = vmatmul.mubr.bf16.gmra.mxu0 %v1193
        %v1281 = vpop.f32.mrf.mxu0
        %v1282 = vadd.f32 %v1198, %v1281
        %v1283 = vpop.f32.mrf.mxu0
        %v1284 = vpop.f32.mrf.mxu0
        %v1285 = vpop.f32.mrf.mxu0
        %1286 = vdwg.mxu0
        %v1287 = vxor.u32 %v1282, 2147483648
        %v1288 = vmul.f32 %v1287, 1.442695
        %v1289 = vpow.pop %v1288
        %v1290 = vadd.f32 %v1289, 1.0
        %v1291 = vrcp.pop %v1290
        %v1292 = vmul.f32 1.0, %v1291
        %v1293 = vmul.f32 %v1282, %v1292
        %s1294 = scalar_lea.vmem [#allocation7], 512
        %v1295 = vld [vmem:[%s1294] sm:$0xf]
        %v1296 = vld [vmem:[%s1294 + $0x4] sm:$0xf]
        %v1297 = vld [vmem:[%s1294 + $0x8] sm:$0xf]
        %v1298 = vld [vmem:[%s1294 + $0xc] sm:$0xf]
        %v1299 = vld [vmem:[%s1294 + $0x10] sm:$0xf]
        %v1300 = vld [vmem:[%s1294 + $0x14] sm:$0xf]
        %v1301 = vld [vmem:[%s1294 + $0x18] sm:$0xf]
        %v1302 = vld [vmem:[%s1294 + $0x1c] sm:$0xf]
        %v1303 = vld [vmem:[%s1294 + $0x20] sm:$0xf]
        %v1304 = vld [vmem:[%s1294 + $0x24] sm:$0xf]
        %v1305 = vld [vmem:[%s1294 + $0x28] sm:$0xf]
        %v1306 = vld [vmem:[%s1294 + $0x2c] sm:$0xf]
        %v1307 = vld [vmem:[%s1294 + $0x30] sm:$0xf]
        %v1308 = vld [vmem:[%s1294 + $0x34] sm:$0xf]
        %v1309 = vld [vmem:[%s1294 + $0x38] sm:$0xf]
        %v1310 = vld [vmem:[%s1294 + $0x3c] sm:$0xf]
        %v1311 = vpack.c.bf16 %v1293, %v1293
        %v1312 = vld [vmem:[#allocation8 + $0xd] sm:$0x1]
        %v1313 = vlaneseq
        %v1314 = vshrl.u32 %v1313, 7
        %v1315 = vsub.s32 0, %v1314
        %v1316 = vrot.slane %v1312, %v1315
        %v1333 = vunpack.c.l.b16 %v1295
        %v1334 = vunpack.c.l.b16 %v1296
        %v1335 = vunpack.c.l.b16 %v1297
        %v1336 = vunpack.c.l.b16 %v1298
        %v1337 = vunpack.c.l.b16 %v1299
        %v1338 = vunpack.c.l.b16 %v1300
        %v1339 = vunpack.c.l.b16 %v1301
        %v1340 = vunpack.c.l.b16 %v1302
        %v1341 = vunpack.c.l.b16 %v1303
        %v1342 = vunpack.c.l.b16 %v1304
        %v1343 = vunpack.c.l.b16 %v1305
        %v1344 = vunpack.c.l.b16 %v1306
        %v1345 = vunpack.c.l.b16 %v1307
        %v1346 = vunpack.c.l.b16 %v1308
        %v1347 = vunpack.c.l.b16 %v1309
        %v1348 = vunpack.c.l.b16 %v1310
        %v1349 = vpack.c.b16 %v1334, %v1333
        %v1350 = vpack.c.b16 %v1336, %v1335
        %v1351 = vpack.c.b16 %v1338, %v1337
        %v1352 = vpack.c.b16 %v1340, %v1339
        %v1353 = vpack.c.b16 %v1342, %v1341
        %v1354 = vpack.c.b16 %v1344, %v1343
        %v1355 = vpack.c.b16 %v1346, %v1345
        %v1356 = vpack.c.b16 %v1348, %v1347
        %1365 = vmatprep.subr.bf16.mxu0 0
        %1366 = vmatpush1.bf16.msra.mxu0 %v1356
        %1367 = vmatprep.subr.bf16.mxu0 0
        %1368 = vmatpush1.bf16.msra.mxu0 %v1355
        %1369 = vmatprep.subr.bf16.mxu0 0
        %1370 = vmatpush1.bf16.msra.mxu0 %v1354
        %1371 = vmatprep.subr.bf16.mxu0 0
        %1372 = vmatpush1.bf16.msra.mxu0 %v1353
        %1373 = vmatprep.subr.bf16.mxu0 0
        %1374 = vmatpush1.bf16.msra.mxu0 %v1352
        %1375 = vmatprep.subr.bf16.mxu0 0
        %1376 = vmatpush1.bf16.msra.mxu0 %v1351
        %1377 = vmatprep.subr.bf16.mxu0 0
        %1378 = vmatpush1.bf16.msra.mxu0 %v1350
        %1379 = vmatprep.subr.bf16.mxu0 0
        %1380 = vmatpush1.bf16.msra.mxu0 %v1349
        %1381 = vmatprep.subr.bf16.mxu0 0
        %1382 = vmatpush2.bf16.msra.mxu0 0
        %1383 = vmatprep.subr.bf16.mxu0 0
        %1384 = vmatpush2.bf16.msra.mxu0 0
        %1385 = vmatprep.subr.bf16.mxu0 0
        %1386 = vmatpush2.bf16.msra.mxu0 0
        %1387 = vmatprep.subr.bf16.mxu0 0
        %1388 = vmatpush2.bf16.msra.mxu0 0
        %1389 = vmatprep.subr.bf16.mxu0 0
        %1390 = vmatpush2.bf16.msra.mxu0 0
        %1391 = vmatprep.subr.bf16.mxu0 0
        %1392 = vmatpush2.bf16.msra.mxu0 0
        %1393 = vmatprep.subr.bf16.mxu0 0
        %1394 = vmatpush2.bf16.msra.mxu0 0
        %1395 = vmatprep.subr.bf16.mxu0 0
        %1396 = vmatpush2.bf16.msra.mxu0 0
        %1397 = vmatprep.mubr.bf16.mxu0 0
        %1398 = vmatmul.mubr.bf16.gmra.mxu0 %v1311
        %v1399 = vpop.f32.mrf.mxu0
        %v1400 = vadd.f32 %v1316, %v1399
        %v1401 = vpop.f32.mrf.mxu0
        %v1402 = vpop.f32.mrf.mxu0
        %v1403 = vpop.f32.mrf.mxu0
        %1404 = vdwg.mxu0
        %v1405 = vxor.u32 %v1400, 2147483648
        %v1406 = vmul.f32 %v1405, 1.442695
        %v1407 = vpow.pop %v1406
        %v1408 = vadd.f32 %v1407, 1.0
        %v1409 = vrcp.pop %v1408
        %v1410 = vmul.f32 1.0, %v1409
        %v1411 = vmul.f32 %v1400, %v1410
        %v1412 = vld [vmem:[#allocation8 + $0xe] sm:$0x1]
        %v1413 = vlaneseq
        %v1414 = vshrl.u32 %v1413, 7
        %v1415 = vsub.s32 0, %v1414
        %v1416 = vrot.slane %v1412, %v1415
        %v1417 = vmul.f32 %v1411, %v1416
        %v1418 = vadd.f32 %v1054, %v1417
        %v1419 = vld [vmem:[#allocation8 + $0xf] sm:$0x1]
        %v1420 = vld [vmem:[#allocation8 + $0x10] sm:$0x1]
        %1421 = vadd.xlane.f32.xlu0 %v1418
        %v1422 = vpop.xlane.xlu0 %1421
        %v1423 = vmul.f32 %v1418, %v1418
        %1424 = vadd.xlane.f32.xlu0 %v1423
        %v1425 = vpop.xlane.xlu0 %1424
        %v1426 = vmul.f32 %v1422, %v433
        %v1427 = vmul.f32 %v1425, %v433
        %v1428 = vmul.f32 %v1426, %v1426
        %v1429 = vsub.f32 %v1427, %v1428
        %v1430 = vsub.f32 %v1418, %v1426
        %v1431 = vadd.f32 %v1429, 1e-06
        %v1432 = vrsqrt.pop %v1431
        %v1433 = vmul.f32 %v1430, %v1432
        %v1434 = vlaneseq
        %v1435 = vshrl.u32 %v1434, 7
        %v1436 = vsub.s32 0, %v1435
        %v1437 = vrot.slane %v1419, %v1436
        %v1438 = vmul.f32 %v1433, %v1437
        %v1439 = vlaneseq
        %v1440 = vshrl.u32 %v1439, 7
        %v1441 = vsub.s32 0, %v1440
        %v1442 = vrot.slane %v1420, %v1441
        %v1443 = vadd.f32 %v1438, %v1442
        %s1444 = scalar_lea.vmem [#allocation7], 576
        %v1445 = vld [vmem:[%s1444] sm:$0xf]
        %v1446 = vld [vmem:[%s1444 + $0x4] sm:$0xf]
        %v1447 = vld [vmem:[%s1444 + $0x8] sm:$0xf]
        %v1448 = vld [vmem:[%s1444 + $0xc] sm:$0xf]
        %v1449 = vld [vmem:[%s1444 + $0x10] sm:$0xf]
        %v1450 = vld [vmem:[%s1444 + $0x14] sm:$0xf]
        %v1451 = vld [vmem:[%s1444 + $0x18] sm:$0xf]
        %v1452 = vld [vmem:[%s1444 + $0x1c] sm:$0xf]
        %v1453 = vld [vmem:[%s1444 + $0x20] sm:$0xf]
        %v1454 = vld [vmem:[%s1444 + $0x24] sm:$0xf]
        %v1455 = vld [vmem:[%s1444 + $0x28] sm:$0xf]
        %v1456 = vld [vmem:[%s1444 + $0x2c] sm:$0xf]
        %v1457 = vld [vmem:[%s1444 + $0x30] sm:$0xf]
        %v1458 = vld [vmem:[%s1444 + $0x34] sm:$0xf]
        %v1459 = vld [vmem:[%s1444 + $0x38] sm:$0xf]
        %v1460 = vld [vmem:[%s1444 + $0x3c] sm:$0xf]
        %v1461 = vpack.c.bf16 %v1443, %v1443
        %v1462 = vld [vmem:[#allocation8 + $0x11] sm:$0x1]
        %v1463 = vlaneseq
        %v1464 = vshrl.u32 %v1463, 7
        %v1465 = vsub.s32 0, %v1464
        %v1466 = vrot.slane %v1462, %v1465
        %v1483 = vunpack.c.l.b16 %v1445
        %v1484 = vunpack.c.l.b16 %v1446
        %v1485 = vunpack.c.l.b16 %v1447
        %v1486 = vunpack.c.l.b16 %v1448
        %v1487 = vunpack.c.l.b16 %v1449
        %v1488 = vunpack.c.l.b16 %v1450
        %v1489 = vunpack.c.l.b16 %v1451
        %v1490 = vunpack.c.l.b16 %v1452
        %v1491 = vunpack.c.l.b16 %v1453
        %v1492 = vunpack.c.l.b16 %v1454
        %v1493 = vunpack.c.l.b16 %v1455
        %v1494 = vunpack.c.l.b16 %v1456
        %v1495 = vunpack.c.l.b16 %v1457
        %v1496 = vunpack.c.l.b16 %v1458
        %v1497 = vunpack.c.l.b16 %v1459
        %v1498 = vunpack.c.l.b16 %v1460
        %v1499 = vpack.c.b16 %v1484, %v1483
        %v1500 = vpack.c.b16 %v1486, %v1485
        %v1501 = vpack.c.b16 %v1488, %v1487
        %v1502 = vpack.c.b16 %v1490, %v1489
        %v1503 = vpack.c.b16 %v1492, %v1491
        %v1504 = vpack.c.b16 %v1494, %v1493
        %v1505 = vpack.c.b16 %v1496, %v1495
        %v1506 = vpack.c.b16 %v1498, %v1497
        %1515 = vmatprep.subr.bf16.mxu0 0
        %1516 = vmatpush1.bf16.msra.mxu0 %v1506
        %1517 = vmatprep.subr.bf16.mxu0 0
        %1518 = vmatpush1.bf16.msra.mxu0 %v1505
        %1519 = vmatprep.subr.bf16.mxu0 0
        %1520 = vmatpush1.bf16.msra.mxu0 %v1504
        %1521 = vmatprep.subr.bf16.mxu0 0
        %1522 = vmatpush1.bf16.msra.mxu0 %v1503
        %1523 = vmatprep.subr.bf16.mxu0 0
        %1524 = vmatpush1.bf16.msra.mxu0 %v1502
        %1525 = vmatprep.subr.bf16.mxu0 0
        %1526 = vmatpush1.bf16.msra.mxu0 %v1501
        %1527 = vmatprep.subr.bf16.mxu0 0
        %1528 = vmatpush1.bf16.msra.mxu0 %v1500
        %1529 = vmatprep.subr.bf16.mxu0 0
        %1530 = vmatpush1.bf16.msra.mxu0 %v1499
        %1531 = vmatprep.subr.bf16.mxu0 0
        %1532 = vmatpush2.bf16.msra.mxu0 0
        %1533 = vmatprep.subr.bf16.mxu0 0
        %1534 = vmatpush2.bf16.msra.mxu0 0
        %1535 = vmatprep.subr.bf16.mxu0 0
        %1536 = vmatpush2.bf16.msra.mxu0 0
        %1537 = vmatprep.subr.bf16.mxu0 0
        %1538 = vmatpush2.bf16.msra.mxu0 0
        %1539 = vmatprep.subr.bf16.mxu0 0
        %1540 = vmatpush2.bf16.msra.mxu0 0
        %1541 = vmatprep.subr.bf16.mxu0 0
        %1542 = vmatpush2.bf16.msra.mxu0 0
        %1543 = vmatprep.subr.bf16.mxu0 0
        %1544 = vmatpush2.bf16.msra.mxu0 0
        %1545 = vmatprep.subr.bf16.mxu0 0
        %1546 = vmatpush2.bf16.msra.mxu0 0
        %1547 = vmatprep.mubr.bf16.mxu0 0
        %1548 = vmatmul.mubr.bf16.gmra.mxu0 %v1461
        %v1549 = vpop.f32.mrf.mxu0
        %v1550 = vadd.f32 %v1466, %v1549
        %v1551 = vpop.f32.mrf.mxu0
        %v1552 = vpop.f32.mrf.mxu0
        %v1553 = vpop.f32.mrf.mxu0
        %1554 = vdwg.mxu0
        %1555 = vst [vmem:[%s295] sm:$0xff] %v1550
        %s1556 = sand.u32 %s143, 1
        %s1557 = scalar_lea.sflag [#allocation4], %s1556
        %s1558 = sand.u32 %s143, 1
        %s1559 = smul.addr %s1558, 8
        %s1560 = scalar_lea.vmem [#allocation10], %s1559
        // Predicated region
        $region53: #{tpu_custom_call.1} parent=35 // pred_check
          %p1561 = pneg %p153
        $region54: #{tpu_custom_call.1} parent=35 // pred_check_branch
          %1563 = sbr.rel (%p1561) target = $region56
        $region55: #{tpu_custom_call.1} parent=35 // pred_region
          %s1565 = ssub.s32 128, 128
          %1566 = vsyncadd %s1557, %s1565
          %s1567 = sadd.s32 %s30, %s29
          %s1568 = smul.addr %s1567, 128
          %s1569 = scalar_lea.hbm %s4, %s1568
          %s1571 = sshll.u32 %s1560, 4
          %s1572 = int_to_ptr.vmem [resolvable:$true] %s1571
          %1574 = dma.vmem_to_hbm [thread:$0]  %s1572, 128, %s1569, %s1557
        $region56: #{tpu_custom_call.1} parent=35 // pred_fallthru
          _
      $region36: #{tpu_custom_call.1} parent=5 // pred_fallthru
        _
      %p1575 = scmp.le.s32.totalorder 2, %s20
      // Predicated region
      $region57: #{tpu_custom_call.1} parent=5 // pred_check
        %p1576 = pneg %p1575
      $region58: #{tpu_custom_call.1} parent=5 // pred_check_branch
        %1578 = sbr.rel (%p1576) target = $region60
      $region59: #{tpu_custom_call.1} parent=5 // pred_region
        %s1579 = ssub.s32 %s20, 2
        // Predicated region
        $region61: #{tpu_custom_call.1} parent=59 // pred_check
          %p1580 = pneg %p159
        $region62: #{tpu_custom_call.1} parent=59 // pred_check_branch
          %1582 = sbr.rel (%p1580) target = $region64
        $region63: #{tpu_custom_call.1} parent=59 // pred_region
          %s1583 = sand.u32 %s144, 1
          %s1584 = scalar_lea.sflag [#allocation4], %s1583
          %s1585 = sand.u32 %s144, 1
          %s1586 = smul.addr %s1585, 8
          %s1587 = scalar_lea.vmem [#allocation10], %s1586
          %1588 = dma.done %s1584, 128
        $region64: #{tpu_custom_call.1} parent=59 // pred_fallthru
          _
      $region60: #{tpu_custom_call.1} parent=5 // pred_fallthru
        _
    $region6: #{tpu_custom_call.1} parent=1 // loop_footer
      %s24 = sadd.s32 1, %s20
    $region7: #{tpu_custom_call.1} parent=1 // loop_footer_branch
      %19 = sbr.rel target = $region3
    $region8: #{tpu_custom_call.1} parent=1 // loop_exit
      _
    %1589 = vsyncpa [#allocation3], 1
    %s1590 = scalar_lea.sflag [#allocation3], 1
    %1591 = vsyncpa %s1590, 1
    %1592 = vsyncpa [#allocation6], 1
    %s1593 = scalar_lea.sflag [#allocation6], 1
    %1594 = vsyncpa %s1593, 1
    %1595 = vsyncpa [#allocation9], 1
    %1596 = vsyncpa [#allocation4], 1
    %s1597 = scalar_lea.sflag [#allocation4], 1
    %1598 = vsyncpa %s1597, 1

</llo_original>
